<compile_context>
chip_gen: v7x
topology: tpu7x:2x2x1
jax: 0.10.0
libtpu: 0.0.40
codegen_flags: <defaults>
</compile_context>

<pallas_src>
import functools
import itertools

import jax
import jax.numpy as jnp
from jax.experimental import pallas as pl
from jax.experimental.pallas import tpu as pltpu


def _rup(x, m):
    return ((x + m - 1) // m) * m


def _vmem_limit_bytes():
    """Per-generation VMEM budget: ~75% of physical, capped at 100 MiB."""
    cap = 0
    try:
        cap = int(getattr(pltpu.get_tpu_info(), "vmem_capacity_bytes", 0) or 0)
    except Exception:
        cap = 0
    if cap <= 0:
        cap = 64 * 1024 * 1024          # conservative fallback (v7x physical)
    return min(cap * 3 // 4, 100 * 1024 * 1024)


VMEM_LIMIT = _vmem_limit_bytes()


# ----------------------------------------------------------------------------
# Fused matmul kernel:  relu?( A @ W + bias [+ identity] )
# Used for 1x1 convs and the im2col fallback convs.
# ----------------------------------------------------------------------------
def _mm_kernel(*refs, relu, has_id):
    if has_id:
        a_ref, b_ref, bias_ref, id_ref, o_ref, acc_ref = refs
    else:
        a_ref, b_ref, bias_ref, o_ref, acc_ref = refs
        id_ref = None

    @pl.when(pl.program_id(2) == 0)
    def _():
        acc_ref[...] = jnp.zeros_like(acc_ref)

    acc_ref[...] += jnp.dot(a_ref[...], b_ref[...],
                            preferred_element_type=jnp.float32)

    @pl.when(pl.program_id(2) == pl.num_programs(2) - 1)
    def _():
        out = acc_ref[...] + bias_ref[...]
        if id_ref is not None:
            out = out + id_ref[...].astype(jnp.float32)
        if relu:
            out = jnp.maximum(out, 0.0)
        o_ref[...] = out.astype(o_ref.dtype)


def fused_matmul(a, w, bias, identity=None, relu=False, out_dtype=jnp.bfloat16):
    """relu?(a @ w + bias [+ identity]); bias broadcasts over rows."""
    M, K = a.shape
    Kw, N = w.shape
    assert K == Kw

    # [PERF] Row (M) tiling: up to 512-row tiles; back off when padding waste
    # would exceed ~25%.
    Mr = _rup(M, 8)
    if Mr <= 512:
        TM = Mr
    else:
        TM = 512
        if _rup(M, 512) - M > M // 4:
            TM = 256 if (_rup(M, 256) - M) <= M // 4 else 128
    Mp = _rup(M, TM)

    # [PERF] Output-channel (N) tiling: always lane-dense (multiple of 128);
    # narrow Cout (64 / 3) is padded to one 128-wide tile and sliced after.
    if N % 512 == 0:
        TN, Np = 512, N
    elif N % 256 == 0:
        TN, Np = 256, N
    elif N % 128 == 0:
        TN, Np = 128, N
    else:
        Np = _rup(N, 128)
        TN = 256 if (Np % 256 == 0 and Np >= 512) else 128

    # Contraction (K) tiling: full-K block for all the common GEMMs, K-loop
    # only for the two large im2col contractions (K=2304 / 4608).
    if K <= 1536:
        Kp = _rup(K, 8)
        TK = Kp
    else:
        Kp = _rup(K, 128)
        TK = next((t for t in (512, 384, 256) if Kp % t == 0), 128)

    a = a.astype(jnp.bfloat16)
    if (Mp, Kp) != (M, K):
        a = jnp.pad(a, ((0, Mp - M), (0, Kp - K)))
    w_p = w if (Kp, Np) == (K, N) else jnp.pad(w, ((0, Kp - K), (0, Np - N)))
    b_p = bias if Np == N else jnp.pad(bias, ((0, 0), (0, Np - N)))

    has_id = identity is not None
    inputs = [a, w_p, b_p]
    in_specs = [
        pl.BlockSpec((TM, TK), lambda i, j, k: (i, k)),
        pl.BlockSpec((TK, TN), lambda i, j, k: (k, j)),
        pl.BlockSpec((1, TN), lambda i, j, k: (0, j)),
    ]
    if has_id:
        idn = identity.astype(jnp.bfloat16)
        if (Mp, Np) != idn.shape:
            idn = jnp.pad(idn, ((0, Mp - M), (0, Np - N)))
        inputs.append(idn)
        in_specs.append(pl.BlockSpec((TM, TN), lambda i, j, k: (i, j)))

    out = pl.pallas_call(
        functools.partial(_mm_kernel, relu=relu, has_id=has_id),
        out_shape=jax.ShapeDtypeStruct((Mp, Np), out_dtype),
        grid_spec=pltpu.PrefetchScalarGridSpec(
            num_scalar_prefetch=0,
            grid=(Mp // TM, Np // TN, Kp // TK),
            in_specs=in_specs,
            out_specs=pl.BlockSpec((TM, TN), lambda i, j, k: (i, j)),
            scratch_shapes=[pltpu.VMEM((TM, TN), jnp.float32)],
        ),
        compiler_params=pltpu.CompilerParams(
            dimension_semantics=("parallel", "parallel", "arbitrary"),
            vmem_limit_bytes=VMEM_LIMIT),
    )(*inputs)
    if (Mp, Np) != (M, N):
        out = out[:M, :N]
    return out


# ----------------------------------------------------------------------------
# Implicit-GEMM 3x3 stride-1 convolution (no im2col materialization).
# The padded image is row-flattened with pitch Wp (multiple of 8); each tap is
# a constant row-shift sliced straight off the VMEM ref into the MXU.
# ----------------------------------------------------------------------------
def _conv3x3_kernel(x_ref, w_ref, b_ref, o_ref, acc_ref, *, rows, shifts, relu):
    # [PERF] slice the ref directly per tap (no (rin, C) value materialization).
    for t, s in enumerate(shifts):
        contrib = jnp.dot(x_ref[0, s:s + rows, :], w_ref[t],
                          preferred_element_type=jnp.float32)
        if t == 0:
            acc_ref[...] = contrib
        else:
            acc_ref[...] += contrib
    out = acc_ref[...] + b_ref[...]
    if relu:
        out = jnp.maximum(out, 0.0)
    o_ref[0] = out.astype(o_ref.dtype)


def conv3x3_s1(x, p, relu):
    """3x3, stride 1, pad 1 conv + folded BN (+ ReLU) via implicit GEMM."""
    N, H, W, C = x.shape
    Cout = p["w"].shape[-1]
    # [PERF] Row pitch rounded to a sublane multiple; dx==0 taps are aligned.
    Wp = _rup(W + 2, 8)
    # Pad 2 rows top / 2 rows bottom (conv pad ring + shift slack), 1 col left,
    # Wp-W-1 cols right.  All pad values MUST stay zero for the row wrap-around
    # of the flattened layout to remain correct.
    xp = jnp.pad(x, ((0, 0), (2, 2), (1, Wp - W - 1), (0, 0)))
    rin = (H + 4) * Wp
    xf = xp.reshape(N, rin, C)
    # [PERF] Only the H valid output rows are computed / written (no padded-grid
    # border rows); the Wp-W pad columns per row are sliced away afterwards.
    rows = H * Wp
    shifts = tuple((dy + 1) * Wp + dx for dy in range(3) for dx in range(3))

    # [PERF] Lane-dense output tile: pad Cout up to a multiple of 128.
    if Cout % 256 == 0:
        TN, Cp = 256, Cout
    elif Cout % 128 == 0:
        TN, Cp = 128, Cout
    else:
        Cp = _rup(Cout, 128)
        TN = 128
    w = p["w"]
    b = p["bias"]
    if Cp != Cout:
        w = jnp.pad(w, ((0, 0), (0, 0), (0, Cp - Cout)))
        b = jnp.pad(b, ((0, 0), (0, Cp - Cout)))

    # TODO(synk): for v7x batch-1 megacore, add a row-tiled parallel grid axis
    # (with a Wp-row halo on the input block) instead of relying on the batch
    # axis for the two-TensorCore split.
    out = pl.pallas_call(
        functools.partial(_conv3x3_kernel, rows=rows, shifts=shifts, relu=relu),
        out_shape=jax.ShapeDtypeStruct((N, rows, Cp), jnp.bfloat16),
        grid_spec=pltpu.PrefetchScalarGridSpec(
            num_scalar_prefetch=0,
            grid=(N, Cp // TN),
            in_specs=[
                pl.BlockSpec((1, rin, C), lambda n, j: (n, 0, 0)),
                pl.BlockSpec((9, C, TN), lambda n, j: (0, 0, j)),
                pl.BlockSpec((1, TN), lambda n, j: (0, j)),
            ],
            out_specs=pl.BlockSpec((1, rows, TN), lambda n, j: (n, 0, j)),
            scratch_shapes=[pltpu.VMEM((rows, TN), jnp.float32)],
        ),
        compiler_params=pltpu.CompilerParams(
            dimension_semantics=("parallel", "parallel"),
            vmem_limit_bytes=VMEM_LIMIT),
    )(xf, w, b)
    # (N, H, Wp, Cp) -> keep the W valid columns and Cout valid channels.
    return out.reshape(N, H, Wp, Cp)[:, :, :W, :Cout]


# ----------------------------------------------------------------------------
# 3x3 stride-2 max pool (pad 1): shift-max over the flattened padded image,
# stride-2 subsample done by a cheap XLA slice afterwards.
# ----------------------------------------------------------------------------
def _maxpool_kernel(x_ref, o_ref, *, rows, shifts):
    m = x_ref[0, shifts[0]:shifts[0] + rows, :]
    for s in shifts[1:]:
        m = jnp.maximum(m, x_ref[0, s:s + rows, :])
    o_ref[0] = m


def maxpool3x3_s2(x):
    N, H, W, C = x.shape
    Wp = _rup(W + 2, 8)
    # Pad values MUST stay -inf (max identity) everywhere.
    xp = jnp.pad(x, ((0, 0), (2, 2), (1, Wp - W - 1), (0, 0)),
                 constant_values=-jnp.inf)
    rin = (H + 4) * Wp
    xf = xp.reshape(N, rin, C)
    rows = H * Wp                                      # valid rows only
    shifts = tuple((dy + 1) * Wp + dx for dy in range(3) for dx in range(3))

    # TODO(synk): the stride-2 row/column subsample is still an XLA slice; the
    # pooled output is 4x smaller than what the kernel writes (stem-only op).
    out = pl.pallas_call(
        functools.partial(_maxpool_kernel, rows=rows, shifts=shifts),
        out_shape=jax.ShapeDtypeStruct((N, rows, C), x.dtype),
        grid_spec=pltpu.PrefetchScalarGridSpec(
            num_scalar_prefetch=0,
            grid=(N,),
            in_specs=[pl.BlockSpec((1, rin, C), lambda n: (n, 0, 0))],
            out_specs=pl.BlockSpec((1, rows, C), lambda n: (n, 0, 0)),
        ),
        compiler_params=pltpu.CompilerParams(
            dimension_semantics=("parallel",),
            vmem_limit_bytes=VMEM_LIMIT),
    )(xf)
    out = out.reshape(N, H, Wp, C)
    return out[:, 0:H:2, 0:W:2, :]


# ----------------------------------------------------------------------------
# Plain-JAX glue: im2col (only for the 7x7 stem, the tiny first_conv and the
# three stride-2 3x3 convs)
# ----------------------------------------------------------------------------
def _im2col(x, ksize, stride, padding):
    N, H, W, C = x.shape
    Ho = (H + 2 * padding - ksize) // stride + 1
    Wo = (W + 2 * padding - ksize) // stride + 1
    if padding > 0:
        x = jnp.pad(x, ((0, 0), (padding, padding), (padding, padding), (0, 0)))
    cols = []
    for i in range(ksize):
        for j in range(ksize):
            cols.append(x[:, i:i + stride * Ho:stride, j:j + stride * Wo:stride, :])
    patches = jnp.concatenate(cols, axis=-1)
    return patches.reshape(N * Ho * Wo, ksize * ksize * C), (N, Ho, Wo)


def conv_im2col(x, p, ksize, stride, padding, relu):
    # TODO(synk): only 4 layers use this explicit im2col patch matrix (7x7 stem
    # + three stride-2 3x3 convs); the HBM blow-up is minor but could be
    # removed by building patch rows in-kernel from a pl.ANY HBM ref.
    patches, (N, Ho, Wo) = _im2col(x, ksize, stride, padding)
    Cout = p["w"].shape[-1]
    out = fused_matmul(patches, p["w"], p["bias"], relu=relu)
    return out.reshape(N, Ho, Wo, Cout)


def conv1x1(x, p, relu, identity=None):
    N, H, W, C = x.shape
    Cout = p["w"].shape[-1]
    a = x.reshape(N * H * W, C)
    idf = None if identity is None else identity.reshape(N * H * W, Cout)
    out = fused_matmul(a, p["w"], p["bias"], identity=idf, relu=relu)
    return out.reshape(N, H, W, Cout)


def _apply_conv(x, p, relu, identity=None):
    if p["ksize"] == 1:
        return conv1x1(x, p, relu, identity)
    if p["implicit"]:
        assert identity is None
        return conv3x3_s1(x, p, relu)
    return conv_im2col(x, p, p["ksize"], p["stride"], p["ksize"] // 2, relu)


# ----------------------------------------------------------------------------
# Deterministic synthetic parameters (matching ResNet152 shapes).
# BatchNorm (eval mode) is folded: w *= scale, bias = beta - scale*mean (+cb).
# ----------------------------------------------------------------------------
_key_counter = itertools.count()
_BASE_KEY = jax.random.PRNGKey(0)


def _next_key():
    return jax.random.fold_in(_BASE_KEY, next(_key_counter))


def _conv_bn_params(cin, cout, ksize, stride=1, conv_bias=False, w_std=0.03):
    w = w_std * jax.random.normal(_next_key(), (ksize, ksize, cin, cout), jnp.float32)
    gamma = jax.random.uniform(_next_key(), (cout,), jnp.float32, 0.8, 1.2)
    beta = 0.1 * jax.random.normal(_next_key(), (cout,), jnp.float32)
    mean = 0.1 * jax.random.normal(_next_key(), (cout,), jnp.float32)
    var = jax.random.uniform(_next_key(), (cout,), jnp.float32, 0.5, 1.5)
    scale = gamma / jnp.sqrt(var + 1e-5)
    bias = beta - scale * mean
    if conv_bias:
        cb = 0.05 * jax.random.normal(_next_key(), (cout,), jnp.float32)
        bias = bias + scale * cb
    w_folded = w * scale                               # fold BN scale into weights
    implicit = (ksize == 3 and stride == 1 and cin >= 8)
    if implicit:
        w_out = w_folded.reshape(ksize * ksize, cin, cout)     # (9, Cin, Cout)
    else:
        w_out = w_folded.reshape(ksize * ksize * cin, cout)    # (K, Cout)
    return {
        "w": w_out.astype(jnp.bfloat16),
        "bias": bias.reshape(1, cout).astype(jnp.float32),
        "implicit": implicit,
        "ksize": ksize,
        "stride": stride,
    }


def _bottleneck_params(inplanes, planes, stride):
    expansion = 4
    p = {
        "conv1": _conv_bn_params(inplanes, planes, 1),
        "conv2": _conv_bn_params(planes, planes, 3, stride=stride),
        "conv3": _conv_bn_params(planes, planes * expansion, 1),
        "stride": stride,
        "downsample": None,
    }
    if stride != 1 or inplanes != planes * expansion:
        p["downsample"] = _conv_bn_params(inplanes, planes * expansion, 1)
    return p


def init_resnet152_params(num_channel=3, class_count=2):
    params = {
        "first_conv": _conv_bn_params(num_channel, 3, 3, conv_bias=True),
        "conv1": _conv_bn_params(3, 64, 7, stride=2),
    }
    layers_cfg = [(64, 3, 1), (128, 8, 2), (256, 36, 2), (512, 3, 2)]  # resnet152
    inplanes, layers = 64, []
    for planes, blocks, stride in layers_cfg:
        blks = [_bottleneck_params(inplanes, planes, stride)]
        inplanes = planes * 4
        for _ in range(blocks - 1):
            blks.append(_bottleneck_params(inplanes, planes, 1))
        layers.append(blks)
    params["layers"] = layers
    fc_in = 512 * 4
    lim = 1.0 / float(fc_in) ** 0.5
    params["fc"] = {
        "w": jax.random.uniform(_next_key(), (fc_in, class_count), jnp.float32, -lim, lim),
        "b": jax.random.uniform(_next_key(), (class_count,), jnp.float32, -lim, lim),
    }
    return params


# ----------------------------------------------------------------------------
# Forward pass
# ----------------------------------------------------------------------------
def bottleneck_forward(x, p):
    # TODO(synk): for the 14x14 / 7x7 layers the whole 1x1->3x3->1x1(+residual)
    # block could be fused into one pallas_call keeping intermediates in VMEM.
    stride = p["stride"]
    if p["downsample"] is not None:
        idn = x[:, ::stride, ::stride, :] if stride != 1 else x
        idn = conv1x1(idn, p["downsample"], relu=False)
    else:
        idn = x
    out = conv1x1(x, p["conv1"], relu=True)
    out = _apply_conv(out, p["conv2"], relu=True)
    # Residual add + ReLU fused into the conv3 matmul epilogue.
    out = conv1x1(out, p["conv3"], relu=True, identity=idn)
    return out


def resnet152_forward(params, x_nchw):
    x = jnp.transpose(x_nchw, (0, 2, 3, 1)).astype(jnp.bfloat16)   # NCHW -> NHWC
    x = _apply_conv(x, params["first_conv"], relu=False)   # first_conv + BN
    x = _apply_conv(x, params["conv1"], relu=True)          # resnet stem conv/bn/relu
    x = maxpool3x3_s2(x)
    for layer in params["layers"]:
        for blk in layer:
            x = bottleneck_forward(x, blk)
    # TODO(synk): adaptive avg-pool + tiny fc (M=2, N=2) kept in plain jnp on
    # purpose -- padding them to MXU tiles would waste >98% of the lanes.
    x = jnp.mean(x.astype(jnp.float32), axis=(1, 2))        # (N, 2048)
    return x @ params["fc"]["w"] + params["fc"]["b"]         # (N, classCount)


if __name__ == "__main__":
    num_channel, class_count = 3, 2
    params = init_resnet152_params(num_channel, class_count)
    x = jax.random.normal(jax.random.PRNGKey(0), (2, num_channel, 32, 32), jnp.float32)
    logits = jax.block_until_ready(resnet152_forward(params, x))
    assert logits.shape == (2, class_count)
    assert bool(jnp.all(jnp.isfinite(logits)))
    print("KERNEL_OK")
</pallas_src>

<mosaic_0001>
module attributes {stable_mosaic.version = 11 : i64} {
  func.func @_mm_kernel(%arg0: i32, %arg1: i32, %arg2: i32, %arg3: memref<512x32xbf16, #tpu.memory_space<vmem>>, %arg4: memref<32x128xbf16, #tpu.memory_space<vmem>>, %arg5: memref<1x128xf32, #tpu.memory_space<vmem>>, %arg6: memref<512x128xbf16, #tpu.memory_space<vmem>>, %arg7: memref<512x128xf32, #tpu.memory_space<vmem>>) attributes {dimension_semantics = [#tpu.dimension_semantics<parallel>, #tpu.dimension_semantics<parallel>, #tpu.dimension_semantics<arbitrary>], iteration_bounds = array<i64: 4, 1, 1>, scalar_prefetch = 0 : i64, scratch_operands = 1 : i64, tpu.core_type = #tpu.core_type<tc>, window_params = [{transform_indices = @transform_0, window_bounds = array<i64: 512, 32>}, {transform_indices = @transform_1, window_bounds = array<i64: 32, 128>}, {transform_indices = @transform_2, window_bounds = array<i64: 1, 128>}, {transform_indices = @transform_3, window_bounds = array<i64: 512, 128>}]} {
    %c0_i32 = arith.constant 0 : i32
    %0 = arith.cmpi eq, %arg2, %c0_i32 : i32
    %1 = arith.extui %0 : i1 to i32
    %c0_i32_0 = arith.constant 0 : i32
    %2 = arith.cmpi ne, %1, %c0_i32_0 : i32
    scf.if %2 {
      %cst_10 = arith.constant 0.000000e+00 : f32
      %12 = vector.broadcast %cst_10 : f32 to vector<512x128xf32>
      %c0_11 = arith.constant 0 : index
      %c0_12 = arith.constant 0 : index
      %13 = vector.load %arg7[%c0_11, %c0_12] : memref<512x128xf32, #tpu.memory_space<vmem>>, vector<512x128xf32>
      tpu.vector_store %arg7[%c0_11, %c0_12], %12 {strides = array<i32>} : memref<512x128xf32, #tpu.memory_space<vmem>>, vector<512x128xf32>,
    } else {
    }
    %c0 = arith.constant 0 : index
    %c0_1 = arith.constant 0 : index
    %3 = vector.load %arg7[%c0, %c0_1] : memref<512x128xf32, #tpu.memory_space<vmem>>, vector<512x128xf32>
    %c0_2 = arith.constant 0 : index
    %c0_3 = arith.constant 0 : index
    %4 = vector.load %arg3[%c0_2, %c0_3] : memref<512x32xbf16, #tpu.memory_space<vmem>>, vector<512x32xbf16>
    %c0_4 = arith.constant 0 : index
    %c0_5 = arith.constant 0 : index
    %5 = vector.load %arg4[%c0_4, %c0_5] : memref<32x128xbf16, #tpu.memory_space<vmem>>, vector<32x128xbf16>
    %cst = arith.constant dense<0.000000e+00> : vector<512x128xf32>
    %6 = tpu.matmul %4, %5, %cst {dimension_numbers = #tpu.dot_dimension_numbers<[1], [0], [0], [1], [0, 0, 1, 1], [], []>} : vector<512x32xbf16>, vector<32x128xbf16>, vector<512x128xf32> -> vector<512x128xf32>
    %7 = arith.addf %3, %6 : vector<512x128xf32>
    %c0_6 = arith.constant 0 : index
    %c0_7 = arith.constant 0 : index
    %8 = vector.load %arg7[%c0_6, %c0_7] : memref<512x128xf32, #tpu.memory_space<vmem>>, vector<512x128xf32>
    tpu.vector_store %arg7[%c0_6, %c0_7], %7 {strides = array<i32>} : memref<512x128xf32, #tpu.memory_space<vmem>>, vector<512x128xf32>,
    %c0_i32_8 = arith.constant 0 : i32
    %9 = arith.cmpi eq, %arg2, %c0_i32_8 : i32
    %10 = arith.extui %9 : i1 to i32
    %c0_i32_9 = arith.constant 0 : i32
    %11 = arith.cmpi ne, %10, %c0_i32_9 : i32
    scf.if %11 {
      %c0_10 = arith.constant 0 : index
      %c0_11 = arith.constant 0 : index
      %12 = vector.load %arg7[%c0_10, %c0_11] : memref<512x128xf32, #tpu.memory_space<vmem>>, vector<512x128xf32>
      %c0_12 = arith.constant 0 : index
      %c0_13 = arith.constant 0 : index
      %13 = vector.load %arg5[%c0_12, %c0_13] : memref<1x128xf32, #tpu.memory_space<vmem>>, vector<1x128xf32>
      %14 = vector.broadcast %13 : vector<1x128xf32> to vector<512x128xf32>
      %15 = arith.addf %12, %14 : vector<512x128xf32>
      %16 = arith.truncf %15 : vector<512x128xf32> to vector<512x128xbf16>
      %c0_14 = arith.constant 0 : index
      %c0_15 = arith.constant 0 : index
      %17 = vector.load %arg6[%c0_14, %c0_15] : memref<512x128xbf16, #tpu.memory_space<vmem>>, vector<512x128xbf16>
      tpu.vector_store %arg6[%c0_14, %c0_15], %16 {strides = array<i32>} : memref<512x128xbf16, #tpu.memory_space<vmem>>, vector<512x128xbf16>,
    } else {
    }
    return
  }
  func.func @transform_0(%arg0: i32, %arg1: i32, %arg2: i32) -> (i32, i32) {
    %c0_i32 = arith.constant 0 : i32
    return %arg0, %arg2 : i32, i32
  }
  func.func @transform_1(%arg0: i32, %arg1: i32, %arg2: i32) -> (i32, i32) {
    %c0_i32 = arith.constant 0 : i32
    return %arg2, %arg1 : i32, i32
  }
  func.func @transform_2(%arg0: i32, %arg1: i32, %arg2: i32) -> (i32, i32) {
    %c0_i32 = arith.constant 0 : i32
    %c0_i32_0 = arith.constant 0 : i32
    return %c0_i32, %arg1 : i32, i32
  }
  func.func @transform_3(%arg0: i32, %arg1: i32, %arg2: i32) -> (i32, i32) {
    %c0_i32 = arith.constant 0 : i32
    return %arg0, %arg1 : i32, i32
  }
}

</mosaic_0001>

<llo_original>
// kernel: tpu_custom_call.1
$region0: #{tpu_custom_call.1}
  #allocation0 [shape = 'u32[]', space=smem, size = 0x4, offset = 0x4, fixed_abs, tag = 'smem constant byte address 0x4 - core index']
  #allocation1 [shape = 'u32[144,128]{1,0:T(1,128)}', space=vmem, size = 0x12000, scoped, tag = 'internal scratch']
  #allocation2 [shape = 'f32[512,128]{1,0:T(8,128)}', space=vmem, size = 0x40000, scoped, tag = 'scratch operand']
  %s0 = inlined_call_operand.vmem [shape: bf16[2048,32], index: 0, kind: input, shape index: {}]
  %s1 = inlined_call_operand.vmem [shape: bf16[32,128], index: 1, kind: input, shape index: {}]
  %s2 = inlined_call_operand.vmem [shape: f32[1,128], index: 2, kind: input, shape index: {}]
  %s3 = inlined_call_operand.hbm [shape: bf16[2048,128], index: 3, kind: output, shape index: {}]
  %s4 = sld [smem:[#allocation0]]
  $region53: #{tpu_custom_call.1} parent=0
    _
  %s6 = ssub.s32 1, %s4
  %s7 = scalar_select 0, %s6, %s4
  $region1: #{tpu_custom_call.1} parent=0
    #allocation3 [shape = 'u8[262144]{0}', space=vmem, size = 0x40000, scoped, tag = 'output window, operand 0']
    #allocation4 [shape = 's32[2]{0}', space=sflag, size = 0x8, scoped, tag = 'scoped memory for tpu_custom_call.1']
    %8 = vsyncpa [#allocation4], 0
    %s9 = scalar_lea.sflag [#allocation4], 1
    %10 = vsyncpa %s9, 0
    loop: start=0, step=1, limit=6
    $region2: #{tpu_custom_call.1} parent=1 // loop_pre_header
      _
    $region3: #{tpu_custom_call.1} parent=1 // loop_header
      %s12 = sphi 0, %s16
      %p13 = scmp.ge.s32.totalorder %s12, 6
      %s19 = sphi 0, %s38
      %s20 = sphi 0, %s34
      %s21 = sphi 0, %s30
      %s22 = sphi 0, %s19
      %s23 = sphi 0, %s20
      %s24 = sphi 0, %s21
      %s25 = sphi 0, %s22
      %s26 = sphi 0, %s23
      %s27 = sphi 0, %s24
      %s43 = sphi 0, %s45
      %s46 = sphi 0, %s43
      %s47 = sphi 0, %s46
      %s63 = sphi 0, %s47
      %s71 = sphi 0, %s73
      %s74 = sphi 0, %s71
      %s75 = sphi 0, %s74
      %s91 = sphi 0, %s75
      %s97 = sphi 0, %s99
      %s100 = sphi 0, %s97
      %s101 = sphi 0, %s100
      %s117 = sphi 0, %s101
      %s125 = sphi 0, %s127
      %s128 = sphi 0, %s125
      %s129 = sphi 0, %s128
      %s145 = sphi 0, %s129
    $region4: #{tpu_custom_call.1} parent=1 // loop_header_branch
      %15 = sbr.rel (%p13) target = $region8
    $region5: #{tpu_custom_call.1} parent=1 // loop_body
      %s17 = ssub.s32 %s12, 1
      %s18 = ssub.s32 %s12, 2
      %s28 = sadd.s32 1, %s21
      %p29 = scmp.ge.s32.totalorder %s28, 1
      %s30 = scalar_select %p29, 0, %s28
      %s31 = sadd.s32 1, %s20
      %s32 = scalar_select %p29, %s31, %s20
      %p33 = scmp.ge.s32.totalorder %s32, 1
      %s34 = scalar_select %p33, 0, %s32
      %s35 = sadd.s32 1, %s19
      %s36 = scalar_select %p33, %s35, %s19
      %p37 = scmp.ge.s32.totalorder %s36, 4
      %s38 = scalar_select %p37, 0, %s36
      %s39 = ssub.s32 %s19, %s38
      %s40 = ssub.s32 %s21, %s30
      %s41 = sor.u32 %s39, %s40
      %p42 = scmp.eq.s32.totalorder %s41, 0
      %s44 = sadd.s32 %s43, 1
      %s45 = scalar_select %p42, %s43, %s44
      %p48 = pneg %p42
      %p49 = scmp.eq.s32.totalorder %s12, 3
      %p50 = por %p48, %p49
      %p51 = scmp.ne.s32.totalorder %s43, %s46
      %p52 = scmp.eq.s32.totalorder %s12, 0
      %p53 = por %p51, %p52
      %p54 = scmp.ne.s32.totalorder %s43, %s46
      %p55 = scmp.eq.s32.totalorder %s17, 3
      %p56 = por %p54, %p55
      %p57 = scmp.ne.s32.totalorder %s46, %s47
      %p58 = scmp.eq.s32.totalorder %s17, 0
      %p59 = por %p57, %p58
      %p60 = scmp.ne.s32.totalorder %s46, %s47
      %p61 = scmp.eq.s32.totalorder %s18, 3
      %p62 = por %p60, %p61
      %p64 = scmp.ne.s32.totalorder %s47, %s63
      %p65 = scmp.eq.s32.totalorder %s18, 0
      %p66 = por %p64, %p65
      %s67 = ssub.s32 %s21, %s30
      %s68 = ssub.s32 %s20, %s34
      %s69 = sor.u32 %s67, %s68
      %p70 = scmp.eq.s32.totalorder %s69, 0
      %s72 = sadd.s32 %s71, 1
      %s73 = scalar_select %p70, %s71, %s72
      %p76 = pneg %p70
      %p77 = scmp.eq.s32.totalorder %s12, 3
      %p78 = por %p76, %p77
      %p79 = scmp.ne.s32.totalorder %s71, %s74
      %p80 = scmp.eq.s32.totalorder %s12, 0
      %p81 = por %p79, %p80
      %p82 = scmp.ne.s32.totalorder %s71, %s74
      %p83 = scmp.eq.s32.totalorder %s17, 3
      %p84 = por %p82, %p83
      %p85 = scmp.ne.s32.totalorder %s74, %s75
      %p86 = scmp.eq.s32.totalorder %s17, 0
      %p87 = por %p85, %p86
      %p88 = scmp.ne.s32.totalorder %s74, %s75
      %p89 = scmp.eq.s32.totalorder %s18, 3
      %p90 = por %p88, %p89
      %p92 = scmp.ne.s32.totalorder %s75, %s91
      %p93 = scmp.eq.s32.totalorder %s18, 0
      %p94 = por %p92, %p93
      %s95 = ssub.s32 %s20, %s34
      %p96 = scmp.eq.s32.totalorder %s95, 0
      %s98 = sadd.s32 %s97, 1
      %s99 = scalar_select %p96, %s97, %s98
      %p102 = pneg %p96
      %p103 = scmp.eq.s32.totalorder %s12, 3
      %p104 = por %p102, %p103
      %p105 = scmp.ne.s32.totalorder %s97, %s100
      %p106 = scmp.eq.s32.totalorder %s12, 0
      %p107 = por %p105, %p106
      %p108 = scmp.ne.s32.totalorder %s97, %s100
      %p109 = scmp.eq.s32.totalorder %s17, 3
      %p110 = por %p108, %p109
      %p111 = scmp.ne.s32.totalorder %s100, %s101
      %p112 = scmp.eq.s32.totalorder %s17, 0
      %p113 = por %p111, %p112
      %p114 = scmp.ne.s32.totalorder %s100, %s101
      %p115 = scmp.eq.s32.totalorder %s18, 3
      %p116 = por %p114, %p115
      %p118 = scmp.ne.s32.totalorder %s101, %s117
      %p119 = scmp.eq.s32.totalorder %s18, 0
      %p120 = por %p118, %p119
      %s121 = ssub.s32 %s19, %s38
      %s122 = ssub.s32 %s20, %s34
      %s123 = sor.u32 %s121, %s122
      %p124 = scmp.eq.s32.totalorder %s123, 0
      %s126 = sadd.s32 %s125, 1
      %s127 = scalar_select %p124, %s125, %s126
      %p130 = pneg %p124
      %p131 = scmp.eq.s32.totalorder %s12, 3
      %p132 = por %p130, %p131
      %p133 = scmp.ne.s32.totalorder %s125, %s128
      %p134 = scmp.eq.s32.totalorder %s12, 0
      %p135 = por %p133, %p134
      %p136 = scmp.ne.s32.totalorder %s125, %s128
      %p137 = scmp.eq.s32.totalorder %s17, 3
      %p138 = por %p136, %p137
      %p139 = scmp.ne.s32.totalorder %s128, %s129
      %p140 = scmp.eq.s32.totalorder %s17, 0
      %p141 = por %p139, %p140
      %p142 = scmp.ne.s32.totalorder %s128, %s129
      %p143 = scmp.eq.s32.totalorder %s18, 3
      %p144 = por %p142, %p143
      %p146 = scmp.ne.s32.totalorder %s129, %s145
      %p147 = scmp.eq.s32.totalorder %s18, 0
      %p148 = por %p146, %p147
      %p149 = scmp.le.s32.totalorder 1, %s12
      %p150 = scmp.lt.s32.totalorder %s12, 5
      %p151 = pnand %p149, %p150
      %p152 = pneg %p151
      // Predicated region
      $region9: #{tpu_custom_call.1} parent=5 // pred_check
        _
      $region10: #{tpu_custom_call.1} parent=5 // pred_check_branch
        %154 = sbr.rel (%p151) target = $region12
      $region11: #{tpu_custom_call.1} parent=5 // pred_region
        %s155 = ssub.s32 %s12, 1
        // Predicated region
        $region13: #{tpu_custom_call.1} parent=11 // pred_check
          %p156 = pneg %p87
        $region14: #{tpu_custom_call.1} parent=11 // pred_check_branch
          %158 = sbr.rel (%p156) target = $region16
        $region15: #{tpu_custom_call.1} parent=11 // pred_region
          %s159 = smul.u32 4, %s24
          %p160 = scmp.lt.s32.totalorder %s159, 3
          %s161 = scalar_select %p160, %s159, 3
          %p162 = scmp.lt.s32.totalorder %s23, 0
          %s163 = scalar_select %p162, %s23, 0
          %s164 = sadd.s32 %s163, %s161
          %s165 = smul.addr %s164, 4
          %s166 = scalar_lea.vmem %s1, %s165
          %s167 = smul.u32 4, %s24
        $region16: #{tpu_custom_call.1} parent=11 // pred_fallthru
          _
        // Predicated region
        $region17: #{tpu_custom_call.1} parent=11 // pred_check
          %p168 = pneg %p113
        $region18: #{tpu_custom_call.1} parent=11 // pred_check_branch
          %170 = sbr.rel (%p168) target = $region20
        $region19: #{tpu_custom_call.1} parent=11 // pred_region
          %p171 = scmp.lt.s32.totalorder %s23, 0
          %s172 = scalar_select %p171, %s23, 0
          %s173 = scalar_lea.vmem %s2, %s172
        $region20: #{tpu_custom_call.1} parent=11 // pred_fallthru
          _
      $region12: #{tpu_custom_call.1} parent=5 // pred_fallthru
        _
      %p174 = scmp.lt.s32.totalorder %s12, 4
      // Predicated region
      $region21: #{tpu_custom_call.1} parent=5 // pred_check
        %p175 = pneg %p174
      $region22: #{tpu_custom_call.1} parent=5 // pred_check_branch
        %177 = sbr.rel (%p175) target = $region24
      $region23: #{tpu_custom_call.1} parent=5 // pred_region
        // Predicated region
        $region25: #{tpu_custom_call.1} parent=23 // pred_check
          %p178 = pneg %p53
        $region26: #{tpu_custom_call.1} parent=23 // pred_check_branch
          %180 = sbr.rel (%p178) target = $region28
        $region27: #{tpu_custom_call.1} parent=23 // pred_region
          %s181 = smul.u32 64, %s19
          %p182 = scmp.lt.s32.totalorder %s181, 255
          %s183 = scalar_select %p182, %s181, 255
          %p184 = scmp.lt.s32.totalorder %s21, 0
          %s185 = scalar_select %p184, %s21, 0
          %s186 = sadd.s32 %s185, %s183
          %s187 = smul.addr %s186, 4
          %s188 = scalar_lea.vmem %s0, %s187
          %s189 = smul.u32 64, %s19
        $region28: #{tpu_custom_call.1} parent=23 // pred_fallthru
          _
      $region24: #{tpu_custom_call.1} parent=5 // pred_fallthru
        _
      %p190 = scmp.le.s32.totalorder 1, %s12
      %p191 = scmp.lt.s32.totalorder %s12, 5
      %p192 = pnand %p190, %p191
      %p193 = pneg %p192
      // Predicated region
      $region29: #{tpu_custom_call.1} parent=5 // pred_check
        _
      $region30: #{tpu_custom_call.1} parent=5 // pred_check_branch
        %195 = sbr.rel (%p192) target = $region32
      $region31: #{tpu_custom_call.1} parent=5 // pred_region
        %s196 = ssub.s32 %s12, 1
        %s197 = smul.u32 64, %s22
        %p198 = scmp.lt.s32.totalorder %s197, 255
        %s199 = scalar_select %p198, %s197, 255
        %p200 = scmp.lt.s32.totalorder %s24, 0
        %s201 = scalar_select %p200, %s24, 0
        %s202 = sadd.s32 %s201, %s199
        %s203 = smul.addr %s202, 4
        %s204 = scalar_lea.vmem %s0, %s203
        %p205 = pneg %p59
        %p206 = pneg %p56
        %s207 = smul.u32 4, %s24
        %p208 = scmp.lt.s32.totalorder %s207, 3
        %s209 = scalar_select %p208, %s207, 3
        %p210 = scmp.lt.s32.totalorder %s23, 0
        %s211 = scalar_select %p210, %s23, 0
        %s212 = sadd.s32 %s211, %s209
        %s213 = smul.addr %s212, 4
        %s214 = scalar_lea.vmem %s1, %s213
        %p215 = pneg %p87
        %p216 = pneg %p84
        %p217 = scmp.lt.s32.totalorder %s23, 0
        %s218 = scalar_select %p217, %s23, 0
        %s219 = scalar_lea.vmem %s2, %s218
        %p220 = pneg %p113
        %p221 = pneg %p110
        %p222 = pneg %p141
        %p223 = pneg %p138
        %s224 = sand.u32 %s128, 1
        %s225 = scalar_lea.sflag [#allocation4], %s224
        %s226 = sand.u32 %s128, 1
        %s227 = smul.addr %s226, 256
        %s228 = scalar_lea.vmem [#allocation3], %s227
        %s229 = smul.u32 64, %s22
        %p230 = scmp.lt.s32.totalorder %s229, 255
        %s231 = scalar_select %p230, %s229, 255
        %p232 = scmp.lt.s32.totalorder %s24, 0
        %s233 = scalar_select %p232, %s24, 0
        %s234 = sadd.s32 %s233, %s231
        %s235 = smul.addr %s234, 4
        %s236 = scalar_lea.vmem %s0, %s235
        %s237 = smul.u32 64, %s22
        %s238 = smul.u32 4, %s24
        %p239 = scmp.lt.s32.totalorder %s238, 3
        %s240 = scalar_select %p239, %s238, 3
        %p241 = scmp.lt.s32.totalorder %s23, 0
        %s242 = scalar_select %p241, %s23, 0
        %s243 = sadd.s32 %s242, %s240
        %s244 = smul.addr %s243, 4
        %s245 = scalar_lea.vmem %s1, %s244
        %s246 = smul.u32 4, %s24
        %p247 = scmp.lt.s32.totalorder %s23, 0
        %s248 = scalar_select %p247, %s23, 0
        %s249 = scalar_lea.vmem %s2, %s248
        %s250 = smul.u32 64, %s22
        %p252 = scmp.eq.s32.totalorder %s24, 0
        // Predicated region
        $region33: #{tpu_custom_call.1} parent=31 // pred_check
          %p253 = pneg %p252
        $region34: #{tpu_custom_call.1} parent=31 // pred_check_branch
          %255 = sbr.rel (%p253) target = $region36
        $region35: #{tpu_custom_call.1} parent=31 // pred_region
          %256 = vst [vmem:[#allocation2] sm:$0xff] 0.0
          %257 = vst [vmem:[#allocation2 + $0x8] sm:$0xff] 0.0
          %258 = vst [vmem:[#allocation2 + $0x10] sm:$0xff] 0.0
          %259 = vst [vmem:[#allocation2 + $0x18] sm:$0xff] 0.0
          %260 = vst [vmem:[#allocation2 + $0x20] sm:$0xff] 0.0
          %261 = vst [vmem:[#allocation2 + $0x28] sm:$0xff] 0.0
          %262 = vst [vmem:[#allocation2 + $0x30] sm:$0xff] 0.0
          %263 = vst [vmem:[#allocation2 + $0x38] sm:$0xff] 0.0
          %264 = vst [vmem:[#allocation2 + $0x40] sm:$0xff] 0.0
          %265 = vst [vmem:[#allocation2 + $0x48] sm:$0xff] 0.0
          %266 = vst [vmem:[#allocation2 + $0x50] sm:$0xff] 0.0
          %267 = vst [vmem:[#allocation2 + $0x58] sm:$0xff] 0.0
          %268 = vst [vmem:[#allocation2 + $0x60] sm:$0xff] 0.0
          %269 = vst [vmem:[#allocation2 + $0x68] sm:$0xff] 0.0
          %270 = vst [vmem:[#allocation2 + $0x70] sm:$0xff] 0.0
          %271 = vst [vmem:[#allocation2 + $0x78] sm:$0xff] 0.0
          %272 = vst [vmem:[#allocation2 + $0x80] sm:$0xff] 0.0
          %273 = vst [vmem:[#allocation2 + $0x88] sm:$0xff] 0.0
          %274 = vst [vmem:[#allocation2 + $0x90] sm:$0xff] 0.0
          %275 = vst [vmem:[#allocation2 + $0x98] sm:$0xff] 0.0
          %276 = vst [vmem:[#allocation2 + $0xa0] sm:$0xff] 0.0
          %277 = vst [vmem:[#allocation2 + $0xa8] sm:$0xff] 0.0
          %278 = vst [vmem:[#allocation2 + $0xb0] sm:$0xff] 0.0
          %279 = vst [vmem:[#allocation2 + $0xb8] sm:$0xff] 0.0
          %280 = vst [vmem:[#allocation2 + $0xc0] sm:$0xff] 0.0
          %281 = vst [vmem:[#allocation2 + $0xc8] sm:$0xff] 0.0
          %282 = vst [vmem:[#allocation2 + $0xd0] sm:$0xff] 0.0
          %283 = vst [vmem:[#allocation2 + $0xd8] sm:$0xff] 0.0
          %284 = vst [vmem:[#allocation2 + $0xe0] sm:$0xff] 0.0
          %285 = vst [vmem:[#allocation2 + $0xe8] sm:$0xff] 0.0
          %286 = vst [vmem:[#allocation2 + $0xf0] sm:$0xff] 0.0
          %287 = vst [vmem:[#allocation2 + $0xf8] sm:$0xff] 0.0
          %288 = vst [vmem:[#allocation2 + $0x100] sm:$0xff] 0.0
          %289 = vst [vmem:[#allocation2 + $0x108] sm:$0xff] 0.0
          %290 = vst [vmem:[#allocation2 + $0x110] sm:$0xff] 0.0
          %291 = vst [vmem:[#allocation2 + $0x118] sm:$0xff] 0.0
          %292 = vst [vmem:[#allocation2 + $0x120] sm:$0xff] 0.0
          %293 = vst [vmem:[#allocation2 + $0x128] sm:$0xff] 0.0
          %294 = vst [vmem:[#allocation2 + $0x130] sm:$0xff] 0.0
          %295 = vst [vmem:[#allocation2 + $0x138] sm:$0xff] 0.0
          %296 = vst [vmem:[#allocation2 + $0x140] sm:$0xff] 0.0
          %297 = vst [vmem:[#allocation2 + $0x148] sm:$0xff] 0.0
          %298 = vst [vmem:[#allocation2 + $0x150] sm:$0xff] 0.0
          %299 = vst [vmem:[#allocation2 + $0x158] sm:$0xff] 0.0
          %300 = vst [vmem:[#allocation2 + $0x160] sm:$0xff] 0.0
          %301 = vst [vmem:[#allocation2 + $0x168] sm:$0xff] 0.0
          %302 = vst [vmem:[#allocation2 + $0x170] sm:$0xff] 0.0
          %303 = vst [vmem:[#allocation2 + $0x178] sm:$0xff] 0.0
          %304 = vst [vmem:[#allocation2 + $0x180] sm:$0xff] 0.0
          %305 = vst [vmem:[#allocation2 + $0x188] sm:$0xff] 0.0
          %306 = vst [vmem:[#allocation2 + $0x190] sm:$0xff] 0.0
          %307 = vst [vmem:[#allocation2 + $0x198] sm:$0xff] 0.0
          %308 = vst [vmem:[#allocation2 + $0x1a0] sm:$0xff] 0.0
          %309 = vst [vmem:[#allocation2 + $0x1a8] sm:$0xff] 0.0
          %310 = vst [vmem:[#allocation2 + $0x1b0] sm:$0xff] 0.0
          %311 = vst [vmem:[#allocation2 + $0x1b8] sm:$0xff] 0.0
          %312 = vst [vmem:[#allocation2 + $0x1c0] sm:$0xff] 0.0
          %313 = vst [vmem:[#allocation2 + $0x1c8] sm:$0xff] 0.0
          %314 = vst [vmem:[#allocation2 + $0x1d0] sm:$0xff] 0.0
          %315 = vst [vmem:[#allocation2 + $0x1d8] sm:$0xff] 0.0
          %316 = vst [vmem:[#allocation2 + $0x1e0] sm:$0xff] 0.0
          %317 = vst [vmem:[#allocation2 + $0x1e8] sm:$0xff] 0.0
          %318 = vst [vmem:[#allocation2 + $0x1f0] sm:$0xff] 0.0
          %319 = vst [vmem:[#allocation2 + $0x1f8] sm:$0xff] 0.0
        $region36: #{tpu_custom_call.1} parent=31 // pred_fallthru
          _
        %v320 = vld [vmem:[#allocation2] sm:$0xff]
        %v321 = vld [vmem:[#allocation2 + $0x8] sm:$0xff]
        %v322 = vld [vmem:[#allocation2 + $0x10] sm:$0xff]
        %v323 = vld [vmem:[#allocation2 + $0x18] sm:$0xff]
        %v324 = vld [vmem:[#allocation2 + $0x20] sm:$0xff]
        %v325 = vld [vmem:[#allocation2 + $0x28] sm:$0xff]
        %v326 = vld [vmem:[#allocation2 + $0x30] sm:$0xff]
        %v327 = vld [vmem:[#allocation2 + $0x38] sm:$0xff]
        %v328 = vld [vmem:[#allocation2 + $0x40] sm:$0xff]
        %v329 = vld [vmem:[#allocation2 + $0x48] sm:$0xff]
        %v330 = vld [vmem:[#allocation2 + $0x50] sm:$0xff]
        %v331 = vld [vmem:[#allocation2 + $0x58] sm:$0xff]
        %v332 = vld [vmem:[#allocation2 + $0x60] sm:$0xff]
        %v333 = vld [vmem:[#allocation2 + $0x68] sm:$0xff]
        %v334 = vld [vmem:[#allocation2 + $0x70] sm:$0xff]
        %v335 = vld [vmem:[#allocation2 + $0x78] sm:$0xff]
        %v336 = vld [vmem:[#allocation2 + $0x80] sm:$0xff]
        %v337 = vld [vmem:[#allocation2 + $0x88] sm:$0xff]
        %v338 = vld [vmem:[#allocation2 + $0x90] sm:$0xff]
        %v339 = vld [vmem:[#allocation2 + $0x98] sm:$0xff]
        %v340 = vld [vmem:[#allocation2 + $0xa0] sm:$0xff]
        %v341 = vld [vmem:[#allocation2 + $0xa8] sm:$0xff]
        %v342 = vld [vmem:[#allocation2 + $0xb0] sm:$0xff]
        %v343 = vld [vmem:[#allocation2 + $0xb8] sm:$0xff]
        %v344 = vld [vmem:[#allocation2 + $0xc0] sm:$0xff]
        %v345 = vld [vmem:[#allocation2 + $0xc8] sm:$0xff]
        %v346 = vld [vmem:[#allocation2 + $0xd0] sm:$0xff]
        %v347 = vld [vmem:[#allocation2 + $0xd8] sm:$0xff]
        %v348 = vld [vmem:[#allocation2 + $0xe0] sm:$0xff]
        %v349 = vld [vmem:[#allocation2 + $0xe8] sm:$0xff]
        %v350 = vld [vmem:[#allocation2 + $0xf0] sm:$0xff]
        %v351 = vld [vmem:[#allocation2 + $0xf8] sm:$0xff]
        %v352 = vld [vmem:[#allocation2 + $0x100] sm:$0xff]
        %v353 = vld [vmem:[#allocation2 + $0x108] sm:$0xff]
        %v354 = vld [vmem:[#allocation2 + $0x110] sm:$0xff]
        %v355 = vld [vmem:[#allocation2 + $0x118] sm:$0xff]
        %v356 = vld [vmem:[#allocation2 + $0x120] sm:$0xff]
        %v357 = vld [vmem:[#allocation2 + $0x128] sm:$0xff]
        %v358 = vld [vmem:[#allocation2 + $0x130] sm:$0xff]
        %v359 = vld [vmem:[#allocation2 + $0x138] sm:$0xff]
        %v360 = vld [vmem:[#allocation2 + $0x140] sm:$0xff]
        %v361 = vld [vmem:[#allocation2 + $0x148] sm:$0xff]
        %v362 = vld [vmem:[#allocation2 + $0x150] sm:$0xff]
        %v363 = vld [vmem:[#allocation2 + $0x158] sm:$0xff]
        %v364 = vld [vmem:[#allocation2 + $0x160] sm:$0xff]
        %v365 = vld [vmem:[#allocation2 + $0x168] sm:$0xff]
        %v366 = vld [vmem:[#allocation2 + $0x170] sm:$0xff]
        %v367 = vld [vmem:[#allocation2 + $0x178] sm:$0xff]
        %v368 = vld [vmem:[#allocation2 + $0x180] sm:$0xff]
        %v369 = vld [vmem:[#allocation2 + $0x188] sm:$0xff]
        %v370 = vld [vmem:[#allocation2 + $0x190] sm:$0xff]
        %v371 = vld [vmem:[#allocation2 + $0x198] sm:$0xff]
        %v372 = vld [vmem:[#allocation2 + $0x1a0] sm:$0xff]
        %v373 = vld [vmem:[#allocation2 + $0x1a8] sm:$0xff]
        %v374 = vld [vmem:[#allocation2 + $0x1b0] sm:$0xff]
        %v375 = vld [vmem:[#allocation2 + $0x1b8] sm:$0xff]
        %v376 = vld [vmem:[#allocation2 + $0x1c0] sm:$0xff]
        %v377 = vld [vmem:[#allocation2 + $0x1c8] sm:$0xff]
        %v378 = vld [vmem:[#allocation2 + $0x1d0] sm:$0xff]
        %v379 = vld [vmem:[#allocation2 + $0x1d8] sm:$0xff]
        %v380 = vld [vmem:[#allocation2 + $0x1e0] sm:$0xff]
        %v381 = vld [vmem:[#allocation2 + $0x1e8] sm:$0xff]
        %v382 = vld [vmem:[#allocation2 + $0x1f0] sm:$0xff]
        %v383 = vld [vmem:[#allocation2 + $0x1f8] sm:$0xff]
        %v384 = vld [vmem:[%s236] sm:$0xf]
        %v385 = vld [vmem:[%s236 + $0x4] sm:$0xf]
        %v386 = vld [vmem:[%s236 + $0x8] sm:$0xf]
        %v387 = vld [vmem:[%s236 + $0xc] sm:$0xf]
        %v388 = vld [vmem:[%s236 + $0x10] sm:$0xf]
        %v389 = vld [vmem:[%s236 + $0x14] sm:$0xf]
        %v390 = vld [vmem:[%s236 + $0x18] sm:$0xf]
        %v391 = vld [vmem:[%s236 + $0x1c] sm:$0xf]
        %v392 = vld [vmem:[%s236 + $0x20] sm:$0xf]
        %v393 = vld [vmem:[%s236 + $0x24] sm:$0xf]
        %v394 = vld [vmem:[%s236 + $0x28] sm:$0xf]
        %v395 = vld [vmem:[%s236 + $0x2c] sm:$0xf]
        %v396 = vld [vmem:[%s236 + $0x30] sm:$0xf]
        %v397 = vld [vmem:[%s236 + $0x34] sm:$0xf]
        %v398 = vld [vmem:[%s236 + $0x38] sm:$0xf]
        %v399 = vld [vmem:[%s236 + $0x3c] sm:$0xf]
        %v400 = vld [vmem:[%s236 + $0x40] sm:$0xf]
        %v401 = vld [vmem:[%s236 + $0x44] sm:$0xf]
        %v402 = vld [vmem:[%s236 + $0x48] sm:$0xf]
        %v403 = vld [vmem:[%s236 + $0x4c] sm:$0xf]
        %v404 = vld [vmem:[%s236 + $0x50] sm:$0xf]
        %v405 = vld [vmem:[%s236 + $0x54] sm:$0xf]
        %v406 = vld [vmem:[%s236 + $0x58] sm:$0xf]
        %v407 = vld [vmem:[%s236 + $0x5c] sm:$0xf]
        %v408 = vld [vmem:[%s236 + $0x60] sm:$0xf]
        %v409 = vld [vmem:[%s236 + $0x64] sm:$0xf]
        %v410 = vld [vmem:[%s236 + $0x68] sm:$0xf]
        %v411 = vld [vmem:[%s236 + $0x6c] sm:$0xf]
        %v412 = vld [vmem:[%s236 + $0x70] sm:$0xf]
        %v413 = vld [vmem:[%s236 + $0x74] sm:$0xf]
        %v414 = vld [vmem:[%s236 + $0x78] sm:$0xf]
        %v415 = vld [vmem:[%s236 + $0x7c] sm:$0xf]
        %v416 = vld [vmem:[%s236 + $0x80] sm:$0xf]
        %v417 = vld [vmem:[%s236 + $0x84] sm:$0xf]
        %v418 = vld [vmem:[%s236 + $0x88] sm:$0xf]
        %v419 = vld [vmem:[%s236 + $0x8c] sm:$0xf]
        %v420 = vld [vmem:[%s236 + $0x90] sm:$0xf]
        %v421 = vld [vmem:[%s236 + $0x94] sm:$0xf]
        %v422 = vld [vmem:[%s236 + $0x98] sm:$0xf]
        %v423 = vld [vmem:[%s236 + $0x9c] sm:$0xf]
        %v424 = vld [vmem:[%s236 + $0xa0] sm:$0xf]
        %v425 = vld [vmem:[%s236 + $0xa4] sm:$0xf]
        %v426 = vld [vmem:[%s236 + $0xa8] sm:$0xf]
        %v427 = vld [vmem:[%s236 + $0xac] sm:$0xf]
        %v428 = vld [vmem:[%s236 + $0xb0] sm:$0xf]
        %v429 = vld [vmem:[%s236 + $0xb4] sm:$0xf]
        %v430 = vld [vmem:[%s236 + $0xb8] sm:$0xf]
        %v431 = vld [vmem:[%s236 + $0xbc] sm:$0xf]
        %v432 = vld [vmem:[%s236 + $0xc0] sm:$0xf]
        %v433 = vld [vmem:[%s236 + $0xc4] sm:$0xf]
        %v434 = vld [vmem:[%s236 + $0xc8] sm:$0xf]
        %v435 = vld [vmem:[%s236 + $0xcc] sm:$0xf]
        %v436 = vld [vmem:[%s236 + $0xd0] sm:$0xf]
        %v437 = vld [vmem:[%s236 + $0xd4] sm:$0xf]
        %v438 = vld [vmem:[%s236 + $0xd8] sm:$0xf]
        %v439 = vld [vmem:[%s236 + $0xdc] sm:$0xf]
        %v440 = vld [vmem:[%s236 + $0xe0] sm:$0xf]
        %v441 = vld [vmem:[%s236 + $0xe4] sm:$0xf]
        %v442 = vld [vmem:[%s236 + $0xe8] sm:$0xf]
        %v443 = vld [vmem:[%s236 + $0xec] sm:$0xf]
        %v444 = vld [vmem:[%s236 + $0xf0] sm:$0xf]
        %v445 = vld [vmem:[%s236 + $0xf4] sm:$0xf]
        %v446 = vld [vmem:[%s236 + $0xf8] sm:$0xf]
        %v447 = vld [vmem:[%s236 + $0xfc] sm:$0xf]
        %v448 = vld [vmem:[%s245] sm:$0xf]
        %v449 = vld [vmem:[%s245 + $0x4] sm:$0xf]
        %v450 = vld [vmem:[%s245 + $0x8] sm:$0xf]
        %v451 = vld [vmem:[%s245 + $0xc] sm:$0xf]
        %v516 = vunpack.c.l.b16 %v384
        %v517 = vunpack.c.l.b16 %v385
        %v518 = vunpack.c.l.b16 %v386
        %v519 = vunpack.c.l.b16 %v387
        %v520 = vunpack.c.l.b16 %v388
        %v521 = vunpack.c.l.b16 %v389
        %v522 = vunpack.c.l.b16 %v390
        %v523 = vunpack.c.l.b16 %v391
        %v524 = vunpack.c.l.b16 %v392
        %v525 = vunpack.c.l.b16 %v393
        %v526 = vunpack.c.l.b16 %v394
        %v527 = vunpack.c.l.b16 %v395
        %v528 = vunpack.c.l.b16 %v396
        %v529 = vunpack.c.l.b16 %v397
        %v530 = vunpack.c.l.b16 %v398
        %v531 = vunpack.c.l.b16 %v399
        %v532 = vunpack.c.l.b16 %v400
        %v533 = vunpack.c.l.b16 %v401
        %v534 = vunpack.c.l.b16 %v402
        %v535 = vunpack.c.l.b16 %v403
        %v536 = vunpack.c.l.b16 %v404
        %v537 = vunpack.c.l.b16 %v405
        %v538 = vunpack.c.l.b16 %v406
        %v539 = vunpack.c.l.b16 %v407
        %v540 = vunpack.c.l.b16 %v408
        %v541 = vunpack.c.l.b16 %v409
        %v542 = vunpack.c.l.b16 %v410
        %v543 = vunpack.c.l.b16 %v411
        %v544 = vunpack.c.l.b16 %v412
        %v545 = vunpack.c.l.b16 %v413
        %v546 = vunpack.c.l.b16 %v414
        %v547 = vunpack.c.l.b16 %v415
        %v548 = vunpack.c.l.b16 %v416
        %v549 = vunpack.c.l.b16 %v417
        %v550 = vunpack.c.l.b16 %v418
        %v551 = vunpack.c.l.b16 %v419
        %v552 = vunpack.c.l.b16 %v420
        %v553 = vunpack.c.l.b16 %v421
        %v554 = vunpack.c.l.b16 %v422
        %v555 = vunpack.c.l.b16 %v423
        %v556 = vunpack.c.l.b16 %v424
        %v557 = vunpack.c.l.b16 %v425
        %v558 = vunpack.c.l.b16 %v426
        %v559 = vunpack.c.l.b16 %v427
        %v560 = vunpack.c.l.b16 %v428
        %v561 = vunpack.c.l.b16 %v429
        %v562 = vunpack.c.l.b16 %v430
        %v563 = vunpack.c.l.b16 %v431
        %v564 = vunpack.c.l.b16 %v432
        %v565 = vunpack.c.l.b16 %v433
        %v566 = vunpack.c.l.b16 %v434
        %v567 = vunpack.c.l.b16 %v435
        %v568 = vunpack.c.l.b16 %v436
        %v569 = vunpack.c.l.b16 %v437
        %v570 = vunpack.c.l.b16 %v438
        %v571 = vunpack.c.l.b16 %v439
        %v572 = vunpack.c.l.b16 %v440
        %v573 = vunpack.c.l.b16 %v441
        %v574 = vunpack.c.l.b16 %v442
        %v575 = vunpack.c.l.b16 %v443
        %v576 = vunpack.c.l.b16 %v444
        %v577 = vunpack.c.l.b16 %v445
        %v578 = vunpack.c.l.b16 %v446
        %v579 = vunpack.c.l.b16 %v447
        %v580 = vpack.c.b16 %v517, %v516
        %v581 = vpack.c.b16 %v519, %v518
        %v582 = vpack.c.b16 %v521, %v520
        %v583 = vpack.c.b16 %v523, %v522
        %v584 = vpack.c.b16 %v525, %v524
        %v585 = vpack.c.b16 %v527, %v526
        %v586 = vpack.c.b16 %v529, %v528
        %v587 = vpack.c.b16 %v531, %v530
        %v588 = vpack.c.b16 %v533, %v532
        %v589 = vpack.c.b16 %v535, %v534
        %v590 = vpack.c.b16 %v537, %v536
        %v591 = vpack.c.b16 %v539, %v538
        %v592 = vpack.c.b16 %v541, %v540
        %v593 = vpack.c.b16 %v543, %v542
        %v594 = vpack.c.b16 %v545, %v544
        %v595 = vpack.c.b16 %v547, %v546
        %v596 = vpack.c.b16 %v549, %v548
        %v597 = vpack.c.b16 %v551, %v550
        %v598 = vpack.c.b16 %v553, %v552
        %v599 = vpack.c.b16 %v555, %v554
        %v600 = vpack.c.b16 %v557, %v556
        %v601 = vpack.c.b16 %v559, %v558
        %v602 = vpack.c.b16 %v561, %v560
        %v603 = vpack.c.b16 %v563, %v562
        %v604 = vpack.c.b16 %v565, %v564
        %v605 = vpack.c.b16 %v567, %v566
        %v606 = vpack.c.b16 %v569, %v568
        %v607 = vpack.c.b16 %v571, %v570
        %v608 = vpack.c.b16 %v573, %v572
        %v609 = vpack.c.b16 %v575, %v574
        %v610 = vpack.c.b16 %v577, %v576
        %v611 = vpack.c.b16 %v579, %v578
        %v616 = vunpack.c.l.b16 %v448
        %v617 = vunpack.c.l.b16 %v449
        %v618 = vunpack.c.l.b16 %v450
        %v619 = vunpack.c.l.b16 %v451
        %v620 = vpack.c.b16 %v617, %v616
        %v621 = vpack.c.b16 %v619, %v618
        %vm624 = vcmask 261120
        %v626 = vsel %vm624, %v580, 0
        %v629 = vsel %vm624, %v581, 0
        %v632 = vsel %vm624, %v582, 0
        %v635 = vsel %vm624, %v583, 0
        %v638 = vsel %vm624, %v584, 0
        %v641 = vsel %vm624, %v585, 0
        %v644 = vsel %vm624, %v586, 0
        %v647 = vsel %vm624, %v587, 0
        %v650 = vsel %vm624, %v588, 0
        %v653 = vsel %vm624, %v589, 0
        %v656 = vsel %vm624, %v590, 0
        %v659 = vsel %vm624, %v591, 0
        %v662 = vsel %vm624, %v592, 0
        %v665 = vsel %vm624, %v593, 0
        %v668 = vsel %vm624, %v594, 0
        %v671 = vsel %vm624, %v595, 0
        %v674 = vsel %vm624, %v596, 0
        %v677 = vsel %vm624, %v597, 0
        %v680 = vsel %vm624, %v598, 0
        %v683 = vsel %vm624, %v599, 0
        %v686 = vsel %vm624, %v600, 0
        %v689 = vsel %vm624, %v601, 0
        %v692 = vsel %vm624, %v602, 0
        %v695 = vsel %vm624, %v603, 0
        %v698 = vsel %vm624, %v604, 0
        %v701 = vsel %vm624, %v605, 0
        %v704 = vsel %vm624, %v606, 0
        %v707 = vsel %vm624, %v607, 0
        %v710 = vsel %vm624, %v608, 0
        %v713 = vsel %vm624, %v609, 0
        %v716 = vsel %vm624, %v610, 0
        %v719 = vsel %vm624, %v611, 0
        %721 = vmatprep.subr.bf16.mxu0 0
        %722 = vmatpush1.bf16.msra.mxu0 %v620
        %723 = vmatprep.subr.bf16.mxu0 0
        %724 = vmatpush1.bf16.msra.mxu0 %v621
        %725 = vmatprep.subr.bf16.mxu0 0
        %726 = vmatpush1.bf16.msra.mxu0 0
        %727 = vmatprep.subr.bf16.mxu0 0
        %728 = vmatpush1.bf16.msra.mxu0 0
        %729 = vmatprep.subr.bf16.mxu0 0
        %730 = vmatpush1.bf16.msra.mxu0 0
        %731 = vmatprep.subr.bf16.mxu0 0
        %732 = vmatpush1.bf16.msra.mxu0 0
        %733 = vmatprep.subr.bf16.mxu0 0
        %734 = vmatpush1.bf16.msra.mxu0 0
        %735 = vmatprep.subr.bf16.mxu0 0
        %736 = vmatpush1.bf16.msra.mxu0 0
        %737 = vmatprep.subr.bf16.mxu0 0
        %738 = vmatpush1.bf16.msra.mxu0 0
        %739 = vmatprep.subr.bf16.mxu0 0
        %740 = vmatpush1.bf16.msra.mxu0 0
        %741 = vmatprep.subr.bf16.mxu0 0
        %742 = vmatpush1.bf16.msra.mxu0 0
        %743 = vmatprep.subr.bf16.mxu0 0
        %744 = vmatpush1.bf16.msra.mxu0 0
        %745 = vmatprep.subr.bf16.mxu0 0
        %746 = vmatpush1.bf16.msra.mxu0 0
        %747 = vmatprep.subr.bf16.mxu0 0
        %748 = vmatpush1.bf16.msra.mxu0 0
        %749 = vmatprep.subr.bf16.mxu0 0
        %750 = vmatpush1.bf16.msra.mxu0 0
        %751 = vmatprep.subr.bf16.mxu0 0
        %752 = vmatpush1.bf16.msra.mxu0 0
        %753 = vmatprep.mubr.bf16.mxu0 0
        %754 = vmatmul.mubr.bf16.gmra.mrb[0].mxu0 %v626
        %v755 = vpop.f32.mrb[0].mxu0
        %v756 = vadd.f32 0.0, %v755
        %v757 = vpop.f32.mrb[0].mxu0
        %v758 = vpop.f32.mrb[0].mxu0
        %v759 = vadd.f32 0.0, %v758
        %v760 = vpop.f32.mrb[0].mxu0
        %761 = vmatprep.mubr.bf16.mxu0 0
        %762 = vmatmul.mubr.bf16.gmra.mrb[0].mxu0 %v629
        %v763 = vpop.f32.mrb[0].mxu0
        %v764 = vadd.f32 0.0, %v763
        %v765 = vpop.f32.mrb[0].mxu0
        %v766 = vpop.f32.mrb[0].mxu0
        %v767 = vadd.f32 0.0, %v766
        %v768 = vpop.f32.mrb[0].mxu0
        %769 = vmatprep.mubr.bf16.mxu0 0
        %770 = vmatmul.mubr.bf16.gmra.mrb[0].mxu0 %v632
        %v771 = vpop.f32.mrb[0].mxu0
        %v772 = vadd.f32 0.0, %v771
        %v773 = vpop.f32.mrb[0].mxu0
        %v774 = vpop.f32.mrb[0].mxu0
        %v775 = vadd.f32 0.0, %v774
        %v776 = vpop.f32.mrb[0].mxu0
        %777 = vmatprep.mubr.bf16.mxu0 0
        %778 = vmatmul.mubr.bf16.gmra.mrb[0].mxu0 %v635
        %v779 = vpop.f32.mrb[0].mxu0
        %v780 = vadd.f32 0.0, %v779
        %v781 = vpop.f32.mrb[0].mxu0
        %v782 = vpop.f32.mrb[0].mxu0
        %v783 = vadd.f32 0.0, %v782
        %v784 = vpop.f32.mrb[0].mxu0
        %785 = vmatprep.mubr.bf16.mxu0 0
        %786 = vmatmul.mubr.bf16.gmra.mrb[0].mxu0 %v638
        %v787 = vpop.f32.mrb[0].mxu0
        %v788 = vadd.f32 0.0, %v787
        %v789 = vpop.f32.mrb[0].mxu0
        %v790 = vpop.f32.mrb[0].mxu0
        %v791 = vadd.f32 0.0, %v790
        %v792 = vpop.f32.mrb[0].mxu0
        %793 = vmatprep.mubr.bf16.mxu0 0
        %794 = vmatmul.mubr.bf16.gmra.mrb[0].mxu0 %v641
        %v795 = vpop.f32.mrb[0].mxu0
        %v796 = vadd.f32 0.0, %v795
        %v797 = vpop.f32.mrb[0].mxu0
        %v798 = vpop.f32.mrb[0].mxu0
        %v799 = vadd.f32 0.0, %v798
        %v800 = vpop.f32.mrb[0].mxu0
        %801 = vmatprep.mubr.bf16.mxu0 0
        %802 = vmatmul.mubr.bf16.gmra.mrb[0].mxu0 %v644
        %v803 = vpop.f32.mrb[0].mxu0
        %v804 = vadd.f32 0.0, %v803
        %v805 = vpop.f32.mrb[0].mxu0
        %v806 = vpop.f32.mrb[0].mxu0
        %v807 = vadd.f32 0.0, %v806
        %v808 = vpop.f32.mrb[0].mxu0
        %809 = vmatprep.mubr.bf16.mxu0 0
        %810 = vmatmul.mubr.bf16.gmra.mrb[0].mxu0 %v647
        %v811 = vpop.f32.mrb[0].mxu0
        %v812 = vadd.f32 0.0, %v811
        %v813 = vpop.f32.mrb[0].mxu0
        %v814 = vpop.f32.mrb[0].mxu0
        %v815 = vadd.f32 0.0, %v814
        %v816 = vpop.f32.mrb[0].mxu0
        %817 = vmatprep.mubr.bf16.mxu0 0
        %818 = vmatmul.mubr.bf16.gmra.mrb[0].mxu0 %v650
        %v819 = vpop.f32.mrb[0].mxu0
        %v820 = vadd.f32 0.0, %v819
        %v821 = vpop.f32.mrb[0].mxu0
        %v822 = vpop.f32.mrb[0].mxu0
        %v823 = vadd.f32 0.0, %v822
        %v824 = vpop.f32.mrb[0].mxu0
        %825 = vmatprep.mubr.bf16.mxu0 0
        %826 = vmatmul.mubr.bf16.gmra.mrb[0].mxu0 %v653
        %v827 = vpop.f32.mrb[0].mxu0
        %v828 = vadd.f32 0.0, %v827
        %v829 = vpop.f32.mrb[0].mxu0
        %v830 = vpop.f32.mrb[0].mxu0
        %v831 = vadd.f32 0.0, %v830
        %v832 = vpop.f32.mrb[0].mxu0
        %833 = vmatprep.mubr.bf16.mxu0 0
        %834 = vmatmul.mubr.bf16.gmra.mrb[0].mxu0 %v656
        %v835 = vpop.f32.mrb[0].mxu0
        %v836 = vadd.f32 0.0, %v835
        %v837 = vpop.f32.mrb[0].mxu0
        %v838 = vpop.f32.mrb[0].mxu0
        %v839 = vadd.f32 0.0, %v838
        %v840 = vpop.f32.mrb[0].mxu0
        %841 = vmatprep.mubr.bf16.mxu0 0
        %842 = vmatmul.mubr.bf16.gmra.mrb[0].mxu0 %v659
        %v843 = vpop.f32.mrb[0].mxu0
        %v844 = vadd.f32 0.0, %v843
        %v845 = vpop.f32.mrb[0].mxu0
        %v846 = vpop.f32.mrb[0].mxu0
        %v847 = vadd.f32 0.0, %v846
        %v848 = vpop.f32.mrb[0].mxu0
        %849 = vmatprep.mubr.bf16.mxu0 0
        %850 = vmatmul.mubr.bf16.gmra.mrb[0].mxu0 %v662
        %v851 = vpop.f32.mrb[0].mxu0
        %v852 = vadd.f32 0.0, %v851
        %v853 = vpop.f32.mrb[0].mxu0
        %v854 = vpop.f32.mrb[0].mxu0
        %v855 = vadd.f32 0.0, %v854
        %v856 = vpop.f32.mrb[0].mxu0
        %857 = vmatprep.mubr.bf16.mxu0 0
        %858 = vmatmul.mubr.bf16.gmra.mrb[0].mxu0 %v665
        %v859 = vpop.f32.mrb[0].mxu0
        %v860 = vadd.f32 0.0, %v859
        %v861 = vpop.f32.mrb[0].mxu0
        %v862 = vpop.f32.mrb[0].mxu0
        %v863 = vadd.f32 0.0, %v862
        %v864 = vpop.f32.mrb[0].mxu0
        %865 = vmatprep.mubr.bf16.mxu0 0
        %866 = vmatmul.mubr.bf16.gmra.mrb[0].mxu0 %v668
        %v867 = vpop.f32.mrb[0].mxu0
        %v868 = vadd.f32 0.0, %v867
        %v869 = vpop.f32.mrb[0].mxu0
        %v870 = vpop.f32.mrb[0].mxu0
        %v871 = vadd.f32 0.0, %v870
        %v872 = vpop.f32.mrb[0].mxu0
        %873 = vmatprep.mubr.bf16.mxu0 0
        %874 = vmatmul.mubr.bf16.gmra.mrb[0].mxu0 %v671
        %v875 = vpop.f32.mrb[0].mxu0
        %v876 = vadd.f32 0.0, %v875
        %v877 = vpop.f32.mrb[0].mxu0
        %v878 = vpop.f32.mrb[0].mxu0
        %v879 = vadd.f32 0.0, %v878
        %v880 = vpop.f32.mrb[0].mxu0
        %881 = vmatprep.mubr.bf16.mxu0 0
        %882 = vmatmul.mubr.bf16.gmra.mrb[0].mxu0 %v674
        %v883 = vpop.f32.mrb[0].mxu0
        %v884 = vadd.f32 0.0, %v883
        %v885 = vpop.f32.mrb[0].mxu0
        %v886 = vpop.f32.mrb[0].mxu0
        %v887 = vadd.f32 0.0, %v886
        %v888 = vpop.f32.mrb[0].mxu0
        %889 = vmatprep.mubr.bf16.mxu0 0
        %890 = vmatmul.mubr.bf16.gmra.mrb[0].mxu0 %v677
        %v891 = vpop.f32.mrb[0].mxu0
        %v892 = vadd.f32 0.0, %v891
        %v893 = vpop.f32.mrb[0].mxu0
        %v894 = vpop.f32.mrb[0].mxu0
        %v895 = vadd.f32 0.0, %v894
        %v896 = vpop.f32.mrb[0].mxu0
        %897 = vmatprep.mubr.bf16.mxu0 0
        %898 = vmatmul.mubr.bf16.gmra.mrb[0].mxu0 %v680
        %v899 = vpop.f32.mrb[0].mxu0
        %v900 = vadd.f32 0.0, %v899
        %v901 = vpop.f32.mrb[0].mxu0
        %v902 = vpop.f32.mrb[0].mxu0
        %v903 = vadd.f32 0.0, %v902
        %v904 = vpop.f32.mrb[0].mxu0
        %905 = vmatprep.mubr.bf16.mxu0 0
        %906 = vmatmul.mubr.bf16.gmra.mrb[0].mxu0 %v683
        %v907 = vpop.f32.mrb[0].mxu0
        %v908 = vadd.f32 0.0, %v907
        %v909 = vpop.f32.mrb[0].mxu0
        %v910 = vpop.f32.mrb[0].mxu0
        %v911 = vadd.f32 0.0, %v910
        %v912 = vpop.f32.mrb[0].mxu0
        %913 = vmatprep.mubr.bf16.mxu0 0
        %914 = vmatmul.mubr.bf16.gmra.mrb[0].mxu0 %v686
        %v915 = vpop.f32.mrb[0].mxu0
        %v916 = vadd.f32 0.0, %v915
        %v917 = vpop.f32.mrb[0].mxu0
        %v918 = vpop.f32.mrb[0].mxu0
        %v919 = vadd.f32 0.0, %v918
        %v920 = vpop.f32.mrb[0].mxu0
        %921 = vmatprep.mubr.bf16.mxu0 0
        %922 = vmatmul.mubr.bf16.gmra.mrb[0].mxu0 %v689
        %v923 = vpop.f32.mrb[0].mxu0
        %v924 = vadd.f32 0.0, %v923
        %v925 = vpop.f32.mrb[0].mxu0
        %v926 = vpop.f32.mrb[0].mxu0
        %v927 = vadd.f32 0.0, %v926
        %v928 = vpop.f32.mrb[0].mxu0
        %929 = vmatprep.mubr.bf16.mxu0 0
        %930 = vmatmul.mubr.bf16.gmra.mrb[0].mxu0 %v692
        %v931 = vpop.f32.mrb[0].mxu0
        %v932 = vadd.f32 0.0, %v931
        %v933 = vpop.f32.mrb[0].mxu0
        %v934 = vpop.f32.mrb[0].mxu0
        %v935 = vadd.f32 0.0, %v934
        %v936 = vpop.f32.mrb[0].mxu0
        %937 = vmatprep.mubr.bf16.mxu0 0
        %938 = vmatmul.mubr.bf16.gmra.mrb[0].mxu0 %v695
        %v939 = vpop.f32.mrb[0].mxu0
        %v940 = vadd.f32 0.0, %v939
        %v941 = vpop.f32.mrb[0].mxu0
        %v942 = vpop.f32.mrb[0].mxu0
        %v943 = vadd.f32 0.0, %v942
        %v944 = vpop.f32.mrb[0].mxu0
        %945 = vmatprep.mubr.bf16.mxu0 0
        %946 = vmatmul.mubr.bf16.gmra.mrb[0].mxu0 %v698
        %v947 = vpop.f32.mrb[0].mxu0
        %v948 = vadd.f32 0.0, %v947
        %v949 = vpop.f32.mrb[0].mxu0
        %v950 = vpop.f32.mrb[0].mxu0
        %v951 = vadd.f32 0.0, %v950
        %v952 = vpop.f32.mrb[0].mxu0
        %953 = vmatprep.mubr.bf16.mxu0 0
        %954 = vmatmul.mubr.bf16.gmra.mrb[0].mxu0 %v701
        %v955 = vpop.f32.mrb[0].mxu0
        %v956 = vadd.f32 0.0, %v955
        %v957 = vpop.f32.mrb[0].mxu0
        %v958 = vpop.f32.mrb[0].mxu0
        %v959 = vadd.f32 0.0, %v958
        %v960 = vpop.f32.mrb[0].mxu0
        %961 = vmatprep.mubr.bf16.mxu0 0
        %962 = vmatmul.mubr.bf16.gmra.mrb[0].mxu0 %v704
        %v963 = vpop.f32.mrb[0].mxu0
        %v964 = vadd.f32 0.0, %v963
        %v965 = vpop.f32.mrb[0].mxu0
        %v966 = vpop.f32.mrb[0].mxu0
        %v967 = vadd.f32 0.0, %v966
        %v968 = vpop.f32.mrb[0].mxu0
        %969 = vmatprep.mubr.bf16.mxu0 0
        %970 = vmatmul.mubr.bf16.gmra.mrb[0].mxu0 %v707
        %v971 = vpop.f32.mrb[0].mxu0
        %v972 = vadd.f32 0.0, %v971
        %v973 = vpop.f32.mrb[0].mxu0
        %v974 = vpop.f32.mrb[0].mxu0
        %v975 = vadd.f32 0.0, %v974
        %v976 = vpop.f32.mrb[0].mxu0
        %977 = vmatprep.mubr.bf16.mxu0 0
        %978 = vmatmul.mubr.bf16.gmra.mrb[0].mxu0 %v710
        %v979 = vpop.f32.mrb[0].mxu0
        %v980 = vadd.f32 0.0, %v979
        %v981 = vpop.f32.mrb[0].mxu0
        %v982 = vpop.f32.mrb[0].mxu0
        %v983 = vadd.f32 0.0, %v982
        %v984 = vpop.f32.mrb[0].mxu0
        %985 = vmatprep.mubr.bf16.mxu0 0
        %986 = vmatmul.mubr.bf16.gmra.mrb[0].mxu0 %v713
        %v987 = vpop.f32.mrb[0].mxu0
        %v988 = vadd.f32 0.0, %v987
        %v989 = vpop.f32.mrb[0].mxu0
        %v990 = vpop.f32.mrb[0].mxu0
        %v991 = vadd.f32 0.0, %v990
        %v992 = vpop.f32.mrb[0].mxu0
        %993 = vmatprep.mubr.bf16.mxu0 0
        %994 = vmatmul.mubr.bf16.gmra.mrb[0].mxu0 %v716
        %v995 = vpop.f32.mrb[0].mxu0
        %v996 = vadd.f32 0.0, %v995
        %v997 = vpop.f32.mrb[0].mxu0
        %v998 = vpop.f32.mrb[0].mxu0
        %v999 = vadd.f32 0.0, %v998
        %v1000 = vpop.f32.mrb[0].mxu0
        %1001 = vmatprep.mubr.bf16.mxu0 0
        %1002 = vmatmul.mubr.bf16.gmra.mrb[0].mxu0 %v719
        %v1003 = vpop.f32.mrb[0].mxu0
        %v1004 = vadd.f32 0.0, %v1003
        %v1005 = vpop.f32.mrb[0].mxu0
        %v1006 = vpop.f32.mrb[0].mxu0
        %v1007 = vadd.f32 0.0, %v1006
        %v1008 = vpop.f32.mrb[0].mxu0
        %1009 = vdwg.mxu0
        %v1010 = vadd.f32 %v320, %v756
        %v1011 = vadd.f32 %v321, %v759
        %v1012 = vadd.f32 %v322, %v764
        %v1013 = vadd.f32 %v323, %v767
        %v1014 = vadd.f32 %v324, %v772
        %v1015 = vadd.f32 %v325, %v775
        %v1016 = vadd.f32 %v326, %v780
        %v1017 = vadd.f32 %v327, %v783
        %v1018 = vadd.f32 %v328, %v788
        %v1019 = vadd.f32 %v329, %v791
        %v1020 = vadd.f32 %v330, %v796
        %v1021 = vadd.f32 %v331, %v799
        %v1022 = vadd.f32 %v332, %v804
        %v1023 = vadd.f32 %v333, %v807
        %v1024 = vadd.f32 %v334, %v812
        %v1025 = vadd.f32 %v335, %v815
        %v1026 = vadd.f32 %v336, %v820
        %v1027 = vadd.f32 %v337, %v823
        %v1028 = vadd.f32 %v338, %v828
        %v1029 = vadd.f32 %v339, %v831
        %v1030 = vadd.f32 %v340, %v836
        %v1031 = vadd.f32 %v341, %v839
        %v1032 = vadd.f32 %v342, %v844
        %v1033 = vadd.f32 %v343, %v847
        %v1034 = vadd.f32 %v344, %v852
        %v1035 = vadd.f32 %v345, %v855
        %v1036 = vadd.f32 %v346, %v860
        %v1037 = vadd.f32 %v347, %v863
        %v1038 = vadd.f32 %v348, %v868
        %v1039 = vadd.f32 %v349, %v871
        %v1040 = vadd.f32 %v350, %v876
        %v1041 = vadd.f32 %v351, %v879
        %v1042 = vadd.f32 %v352, %v884
        %v1043 = vadd.f32 %v353, %v887
        %v1044 = vadd.f32 %v354, %v892
        %v1045 = vadd.f32 %v355, %v895
        %v1046 = vadd.f32 %v356, %v900
        %v1047 = vadd.f32 %v357, %v903
        %v1048 = vadd.f32 %v358, %v908
        %v1049 = vadd.f32 %v359, %v911
        %v1050 = vadd.f32 %v360, %v916
        %v1051 = vadd.f32 %v361, %v919
        %v1052 = vadd.f32 %v362, %v924
        %v1053 = vadd.f32 %v363, %v927
        %v1054 = vadd.f32 %v364, %v932
        %v1055 = vadd.f32 %v365, %v935
        %v1056 = vadd.f32 %v366, %v940
        %v1057 = vadd.f32 %v367, %v943
        %v1058 = vadd.f32 %v368, %v948
        %v1059 = vadd.f32 %v369, %v951
        %v1060 = vadd.f32 %v370, %v956
        %v1061 = vadd.f32 %v371, %v959
        %v1062 = vadd.f32 %v372, %v964
        %v1063 = vadd.f32 %v373, %v967
        %v1064 = vadd.f32 %v374, %v972
        %v1065 = vadd.f32 %v375, %v975
        %v1066 = vadd.f32 %v376, %v980
        %v1067 = vadd.f32 %v377, %v983
        %v1068 = vadd.f32 %v378, %v988
        %v1069 = vadd.f32 %v379, %v991
        %v1070 = vadd.f32 %v380, %v996
        %v1071 = vadd.f32 %v381, %v999
        %v1072 = vadd.f32 %v382, %v1004
        %v1073 = vadd.f32 %v383, %v1007
        %1074 = vst [vmem:[#allocation2] sm:$0xff] %v1010
        %1075 = vst [vmem:[#allocation2 + $0x8] sm:$0xff] %v1011
        %1076 = vst [vmem:[#allocation2 + $0x10] sm:$0xff] %v1012
        %1077 = vst [vmem:[#allocation2 + $0x18] sm:$0xff] %v1013
        %1078 = vst [vmem:[#allocation2 + $0x20] sm:$0xff] %v1014
        %1079 = vst [vmem:[#allocation2 + $0x28] sm:$0xff] %v1015
        %1080 = vst [vmem:[#allocation2 + $0x30] sm:$0xff] %v1016
        %1081 = vst [vmem:[#allocation2 + $0x38] sm:$0xff] %v1017
        %1082 = vst [vmem:[#allocation2 + $0x40] sm:$0xff] %v1018
        %1083 = vst [vmem:[#allocation2 + $0x48] sm:$0xff] %v1019
        %1084 = vst [vmem:[#allocation2 + $0x50] sm:$0xff] %v1020
        %1085 = vst [vmem:[#allocation2 + $0x58] sm:$0xff] %v1021
        %1086 = vst [vmem:[#allocation2 + $0x60] sm:$0xff] %v1022
        %1087 = vst [vmem:[#allocation2 + $0x68] sm:$0xff] %v1023
        %1088 = vst [vmem:[#allocation2 + $0x70] sm:$0xff] %v1024
        %1089 = vst [vmem:[#allocation2 + $0x78] sm:$0xff] %v1025
        %1090 = vst [vmem:[#allocation2 + $0x80] sm:$0xff] %v1026
        %1091 = vst [vmem:[#allocation2 + $0x88] sm:$0xff] %v1027
        %1092 = vst [vmem:[#allocation2 + $0x90] sm:$0xff] %v1028
        %1093 = vst [vmem:[#allocation2 + $0x98] sm:$0xff] %v1029
        %1094 = vst [vmem:[#allocation2 + $0xa0] sm:$0xff] %v1030
        %1095 = vst [vmem:[#allocation2 + $0xa8] sm:$0xff] %v1031
        %1096 = vst [vmem:[#allocation2 + $0xb0] sm:$0xff] %v1032
        %1097 = vst [vmem:[#allocation2 + $0xb8] sm:$0xff] %v1033
        %1098 = vst [vmem:[#allocation2 + $0xc0] sm:$0xff] %v1034
        %1099 = vst [vmem:[#allocation2 + $0xc8] sm:$0xff] %v1035
        %1100 = vst [vmem:[#allocation2 + $0xd0] sm:$0xff] %v1036
        %1101 = vst [vmem:[#allocation2 + $0xd8] sm:$0xff] %v1037
        %1102 = vst [vmem:[#allocation2 + $0xe0] sm:$0xff] %v1038
        %1103 = vst [vmem:[#allocation2 + $0xe8] sm:$0xff] %v1039
        %1104 = vst [vmem:[#allocation2 + $0xf0] sm:$0xff] %v1040
        %1105 = vst [vmem:[#allocation2 + $0xf8] sm:$0xff] %v1041
        %1106 = vst [vmem:[#allocation2 + $0x100] sm:$0xff] %v1042
        %1107 = vst [vmem:[#allocation2 + $0x108] sm:$0xff] %v1043
        %1108 = vst [vmem:[#allocation2 + $0x110] sm:$0xff] %v1044
        %1109 = vst [vmem:[#allocation2 + $0x118] sm:$0xff] %v1045
        %1110 = vst [vmem:[#allocation2 + $0x120] sm:$0xff] %v1046
        %1111 = vst [vmem:[#allocation2 + $0x128] sm:$0xff] %v1047
        %1112 = vst [vmem:[#allocation2 + $0x130] sm:$0xff] %v1048
        %1113 = vst [vmem:[#allocation2 + $0x138] sm:$0xff] %v1049
        %1114 = vst [vmem:[#allocation2 + $0x140] sm:$0xff] %v1050
        %1115 = vst [vmem:[#allocation2 + $0x148] sm:$0xff] %v1051
        %1116 = vst [vmem:[#allocation2 + $0x150] sm:$0xff] %v1052
        %1117 = vst [vmem:[#allocation2 + $0x158] sm:$0xff] %v1053
        %1118 = vst [vmem:[#allocation2 + $0x160] sm:$0xff] %v1054
        %1119 = vst [vmem:[#allocation2 + $0x168] sm:$0xff] %v1055
        %1120 = vst [vmem:[#allocation2 + $0x170] sm:$0xff] %v1056
        %1121 = vst [vmem:[#allocation2 + $0x178] sm:$0xff] %v1057
        %1122 = vst [vmem:[#allocation2 + $0x180] sm:$0xff] %v1058
        %1123 = vst [vmem:[#allocation2 + $0x188] sm:$0xff] %v1059
        %1124 = vst [vmem:[#allocation2 + $0x190] sm:$0xff] %v1060
        %1125 = vst [vmem:[#allocation2 + $0x198] sm:$0xff] %v1061
        %1126 = vst [vmem:[#allocation2 + $0x1a0] sm:$0xff] %v1062
        %1127 = vst [vmem:[#allocation2 + $0x1a8] sm:$0xff] %v1063
        %1128 = vst [vmem:[#allocation2 + $0x1b0] sm:$0xff] %v1064
        %1129 = vst [vmem:[#allocation2 + $0x1b8] sm:$0xff] %v1065
        %1130 = vst [vmem:[#allocation2 + $0x1c0] sm:$0xff] %v1066
        %1131 = vst [vmem:[#allocation2 + $0x1c8] sm:$0xff] %v1067
        %1132 = vst [vmem:[#allocation2 + $0x1d0] sm:$0xff] %v1068
        %1133 = vst [vmem:[#allocation2 + $0x1d8] sm:$0xff] %v1069
        %1134 = vst [vmem:[#allocation2 + $0x1e0] sm:$0xff] %v1070
        %1135 = vst [vmem:[#allocation2 + $0x1e8] sm:$0xff] %v1071
        %1136 = vst [vmem:[#allocation2 + $0x1f0] sm:$0xff] %v1072
        %1137 = vst [vmem:[#allocation2 + $0x1f8] sm:$0xff] %v1073
        // Predicated region
        $region37: #{tpu_custom_call.1} parent=31 // pred_check
          %p1138 = pneg %p252
        $region38: #{tpu_custom_call.1} parent=31 // pred_check_branch
          %1140 = sbr.rel (%p1138) target = $region40
        $region39: #{tpu_custom_call.1} parent=31 // pred_region
          %v1141 = vld [vmem:[#allocation2] sm:$0xff]
          %v1142 = vld [vmem:[#allocation2 + $0x8] sm:$0xff]
          %v1143 = vld [vmem:[#allocation2 + $0x10] sm:$0xff]
          %v1144 = vld [vmem:[#allocation2 + $0x18] sm:$0xff]
          %v1145 = vld [vmem:[#allocation2 + $0x20] sm:$0xff]
          %v1146 = vld [vmem:[#allocation2 + $0x28] sm:$0xff]
          %v1147 = vld [vmem:[#allocation2 + $0x30] sm:$0xff]
          %v1148 = vld [vmem:[#allocation2 + $0x38] sm:$0xff]
          %v1149 = vld [vmem:[#allocation2 + $0x40] sm:$0xff]
          %v1150 = vld [vmem:[#allocation2 + $0x48] sm:$0xff]
          %v1151 = vld [vmem:[#allocation2 + $0x50] sm:$0xff]
          %v1152 = vld [vmem:[#allocation2 + $0x58] sm:$0xff]
          %v1153 = vld [vmem:[#allocation2 + $0x60] sm:$0xff]
          %v1154 = vld [vmem:[#allocation2 + $0x68] sm:$0xff]
          %v1155 = vld [vmem:[#allocation2 + $0x70] sm:$0xff]
          %v1156 = vld [vmem:[#allocation2 + $0x78] sm:$0xff]
          %v1157 = vld [vmem:[#allocation2 + $0x80] sm:$0xff]
          %v1158 = vld [vmem:[#allocation2 + $0x88] sm:$0xff]
          %v1159 = vld [vmem:[#allocation2 + $0x90] sm:$0xff]
          %v1160 = vld [vmem:[#allocation2 + $0x98] sm:$0xff]
          %v1161 = vld [vmem:[#allocation2 + $0xa0] sm:$0xff]
          %v1162 = vld [vmem:[#allocation2 + $0xa8] sm:$0xff]
          %v1163 = vld [vmem:[#allocation2 + $0xb0] sm:$0xff]
          %v1164 = vld [vmem:[#allocation2 + $0xb8] sm:$0xff]
          %v1165 = vld [vmem:[#allocation2 + $0xc0] sm:$0xff]
          %v1166 = vld [vmem:[#allocation2 + $0xc8] sm:$0xff]
          %v1167 = vld [vmem:[#allocation2 + $0xd0] sm:$0xff]
          %v1168 = vld [vmem:[#allocation2 + $0xd8] sm:$0xff]
          %v1169 = vld [vmem:[#allocation2 + $0xe0] sm:$0xff]
          %v1170 = vld [vmem:[#allocation2 + $0xe8] sm:$0xff]
          %v1171 = vld [vmem:[#allocation2 + $0xf0] sm:$0xff]
          %v1172 = vld [vmem:[#allocation2 + $0xf8] sm:$0xff]
          %v1173 = vld [vmem:[#allocation2 + $0x100] sm:$0xff]
          %v1174 = vld [vmem:[#allocation2 + $0x108] sm:$0xff]
          %v1175 = vld [vmem:[#allocation2 + $0x110] sm:$0xff]
          %v1176 = vld [vmem:[#allocation2 + $0x118] sm:$0xff]
          %v1177 = vld [vmem:[#allocation2 + $0x120] sm:$0xff]
          %v1178 = vld [vmem:[#allocation2 + $0x128] sm:$0xff]
          %v1179 = vld [vmem:[#allocation2 + $0x130] sm:$0xff]
          %v1180 = vld [vmem:[#allocation2 + $0x138] sm:$0xff]
          %v1181 = vld [vmem:[#allocation2 + $0x140] sm:$0xff]
          %v1182 = vld [vmem:[#allocation2 + $0x148] sm:$0xff]
          %v1183 = vld [vmem:[#allocation2 + $0x150] sm:$0xff]
          %v1184 = vld [vmem:[#allocation2 + $0x158] sm:$0xff]
          %v1185 = vld [vmem:[#allocation2 + $0x160] sm:$0xff]
          %v1186 = vld [vmem:[#allocation2 + $0x168] sm:$0xff]
          %v1187 = vld [vmem:[#allocation2 + $0x170] sm:$0xff]
          %v1188 = vld [vmem:[#allocation2 + $0x178] sm:$0xff]
          %v1189 = vld [vmem:[#allocation2 + $0x180] sm:$0xff]
          %v1190 = vld [vmem:[#allocation2 + $0x188] sm:$0xff]
          %v1191 = vld [vmem:[#allocation2 + $0x190] sm:$0xff]
          %v1192 = vld [vmem:[#allocation2 + $0x198] sm:$0xff]
          %v1193 = vld [vmem:[#allocation2 + $0x1a0] sm:$0xff]
          %v1194 = vld [vmem:[#allocation2 + $0x1a8] sm:$0xff]
          %v1195 = vld [vmem:[#allocation2 + $0x1b0] sm:$0xff]
          %v1196 = vld [vmem:[#allocation2 + $0x1b8] sm:$0xff]
          %v1197 = vld [vmem:[#allocation2 + $0x1c0] sm:$0xff]
          %v1198 = vld [vmem:[#allocation2 + $0x1c8] sm:$0xff]
          %v1199 = vld [vmem:[#allocation2 + $0x1d0] sm:$0xff]
          %v1200 = vld [vmem:[#allocation2 + $0x1d8] sm:$0xff]
          %v1201 = vld [vmem:[#allocation2 + $0x1e0] sm:$0xff]
          %v1202 = vld [vmem:[#allocation2 + $0x1e8] sm:$0xff]
          %v1203 = vld [vmem:[#allocation2 + $0x1f0] sm:$0xff]
          %v1204 = vld [vmem:[#allocation2 + $0x1f8] sm:$0xff]
          %v1205 = vld [vmem:[%s249] sm:$0x1]
          %v1207 = vlaneseq
          %v1208 = vshrl.u32 %v1207, 7
          %v1209 = vsub.s32 0, %v1208
          %v1210 = vrot.slane %v1205, %v1209
          %v1212 = vadd.f32 %v1141, %v1210
          %v1213 = vadd.f32 %v1142, %v1210
          %v1214 = vadd.f32 %v1143, %v1210
          %v1215 = vadd.f32 %v1144, %v1210
          %v1216 = vadd.f32 %v1145, %v1210
          %v1217 = vadd.f32 %v1146, %v1210
          %v1218 = vadd.f32 %v1147, %v1210
          %v1219 = vadd.f32 %v1148, %v1210
          %v1220 = vadd.f32 %v1149, %v1210
          %v1221 = vadd.f32 %v1150, %v1210
          %v1222 = vadd.f32 %v1151, %v1210
          %v1223 = vadd.f32 %v1152, %v1210
          %v1224 = vadd.f32 %v1153, %v1210
          %v1225 = vadd.f32 %v1154, %v1210
          %v1226 = vadd.f32 %v1155, %v1210
          %v1227 = vadd.f32 %v1156, %v1210
          %v1228 = vadd.f32 %v1157, %v1210
          %v1229 = vadd.f32 %v1158, %v1210
          %v1230 = vadd.f32 %v1159, %v1210
          %v1231 = vadd.f32 %v1160, %v1210
          %v1232 = vadd.f32 %v1161, %v1210
          %v1233 = vadd.f32 %v1162, %v1210
          %v1234 = vadd.f32 %v1163, %v1210
          %v1235 = vadd.f32 %v1164, %v1210
          %v1236 = vadd.f32 %v1165, %v1210
          %v1237 = vadd.f32 %v1166, %v1210
          %v1238 = vadd.f32 %v1167, %v1210
          %v1239 = vadd.f32 %v1168, %v1210
          %v1240 = vadd.f32 %v1169, %v1210
          %v1241 = vadd.f32 %v1170, %v1210
          %v1242 = vadd.f32 %v1171, %v1210
          %v1243 = vadd.f32 %v1172, %v1210
          %v1244 = vadd.f32 %v1173, %v1210
          %v1245 = vadd.f32 %v1174, %v1210
          %v1246 = vadd.f32 %v1175, %v1210
          %v1247 = vadd.f32 %v1176, %v1210
          %v1248 = vadd.f32 %v1177, %v1210
          %v1249 = vadd.f32 %v1178, %v1210
          %v1250 = vadd.f32 %v1179, %v1210
          %v1251 = vadd.f32 %v1180, %v1210
          %v1252 = vadd.f32 %v1181, %v1210
          %v1253 = vadd.f32 %v1182, %v1210
          %v1254 = vadd.f32 %v1183, %v1210
          %v1255 = vadd.f32 %v1184, %v1210
          %v1256 = vadd.f32 %v1185, %v1210
          %v1257 = vadd.f32 %v1186, %v1210
          %v1258 = vadd.f32 %v1187, %v1210
          %v1259 = vadd.f32 %v1188, %v1210
          %v1260 = vadd.f32 %v1189, %v1210
          %v1261 = vadd.f32 %v1190, %v1210
          %v1262 = vadd.f32 %v1191, %v1210
          %v1263 = vadd.f32 %v1192, %v1210
          %v1264 = vadd.f32 %v1193, %v1210
          %v1265 = vadd.f32 %v1194, %v1210
          %v1266 = vadd.f32 %v1195, %v1210
          %v1267 = vadd.f32 %v1196, %v1210
          %v1268 = vadd.f32 %v1197, %v1210
          %v1269 = vadd.f32 %v1198, %v1210
          %v1270 = vadd.f32 %v1199, %v1210
          %v1271 = vadd.f32 %v1200, %v1210
          %v1272 = vadd.f32 %v1201, %v1210
          %v1273 = vadd.f32 %v1202, %v1210
          %v1274 = vadd.f32 %v1203, %v1210
          %v1275 = vadd.f32 %v1204, %v1210
          %v1276 = vpack.c.bf16 %v1213, %v1212
          %v1277 = vpack.c.bf16 %v1215, %v1214
          %v1278 = vpack.c.bf16 %v1217, %v1216
          %v1279 = vpack.c.bf16 %v1219, %v1218
          %v1280 = vpack.c.bf16 %v1221, %v1220
          %v1281 = vpack.c.bf16 %v1223, %v1222
          %v1282 = vpack.c.bf16 %v1225, %v1224
          %v1283 = vpack.c.bf16 %v1227, %v1226
          %v1284 = vpack.c.bf16 %v1229, %v1228
          %v1285 = vpack.c.bf16 %v1231, %v1230
          %v1286 = vpack.c.bf16 %v1233, %v1232
          %v1287 = vpack.c.bf16 %v1235, %v1234
          %v1288 = vpack.c.bf16 %v1237, %v1236
          %v1289 = vpack.c.bf16 %v1239, %v1238
          %v1290 = vpack.c.bf16 %v1241, %v1240
          %v1291 = vpack.c.bf16 %v1243, %v1242
          %v1292 = vpack.c.bf16 %v1245, %v1244
          %v1293 = vpack.c.bf16 %v1247, %v1246
          %v1294 = vpack.c.bf16 %v1249, %v1248
          %v1295 = vpack.c.bf16 %v1251, %v1250
          %v1296 = vpack.c.bf16 %v1253, %v1252
          %v1297 = vpack.c.bf16 %v1255, %v1254
          %v1298 = vpack.c.bf16 %v1257, %v1256
          %v1299 = vpack.c.bf16 %v1259, %v1258
          %v1300 = vpack.c.bf16 %v1261, %v1260
          %v1301 = vpack.c.bf16 %v1263, %v1262
          %v1302 = vpack.c.bf16 %v1265, %v1264
          %v1303 = vpack.c.bf16 %v1267, %v1266
          %v1304 = vpack.c.bf16 %v1269, %v1268
          %v1305 = vpack.c.bf16 %v1271, %v1270
          %v1306 = vpack.c.bf16 %v1273, %v1272
          %v1307 = vpack.c.bf16 %v1275, %v1274
          %v1340 = vunpack.c.l.b16 %v1276
          %v1341 = vunpack.c.h.b16 %v1276
          %v1342 = vunpack.c.l.b16 %v1277
          %v1343 = vunpack.c.h.b16 %v1277
          %v1344 = vunpack.c.l.b16 %v1278
          %v1345 = vunpack.c.h.b16 %v1278
          %v1346 = vunpack.c.l.b16 %v1279
          %v1347 = vunpack.c.h.b16 %v1279
          %v1348 = vunpack.c.l.b16 %v1280
          %v1349 = vunpack.c.h.b16 %v1280
          %v1350 = vunpack.c.l.b16 %v1281
          %v1351 = vunpack.c.h.b16 %v1281
          %v1352 = vunpack.c.l.b16 %v1282
          %v1353 = vunpack.c.h.b16 %v1282
          %v1354 = vunpack.c.l.b16 %v1283
          %v1355 = vunpack.c.h.b16 %v1283
          %v1356 = vunpack.c.l.b16 %v1284
          %v1357 = vunpack.c.h.b16 %v1284
          %v1358 = vunpack.c.l.b16 %v1285
          %v1359 = vunpack.c.h.b16 %v1285
          %v1360 = vunpack.c.l.b16 %v1286
          %v1361 = vunpack.c.h.b16 %v1286
          %v1362 = vunpack.c.l.b16 %v1287
          %v1363 = vunpack.c.h.b16 %v1287
          %v1364 = vunpack.c.l.b16 %v1288
          %v1365 = vunpack.c.h.b16 %v1288
          %v1366 = vunpack.c.l.b16 %v1289
          %v1367 = vunpack.c.h.b16 %v1289
          %v1368 = vunpack.c.l.b16 %v1290
          %v1369 = vunpack.c.h.b16 %v1290
          %v1370 = vunpack.c.l.b16 %v1291
          %v1371 = vunpack.c.h.b16 %v1291
          %v1372 = vunpack.c.l.b16 %v1292
          %v1373 = vunpack.c.h.b16 %v1292
          %v1374 = vunpack.c.l.b16 %v1293
          %v1375 = vunpack.c.h.b16 %v1293
          %v1376 = vunpack.c.l.b16 %v1294
          %v1377 = vunpack.c.h.b16 %v1294
          %v1378 = vunpack.c.l.b16 %v1295
          %v1379 = vunpack.c.h.b16 %v1295
          %v1380 = vunpack.c.l.b16 %v1296
          %v1381 = vunpack.c.h.b16 %v1296
          %v1382 = vunpack.c.l.b16 %v1297
          %v1383 = vunpack.c.h.b16 %v1297
          %v1384 = vunpack.c.l.b16 %v1298
          %v1385 = vunpack.c.h.b16 %v1298
          %v1386 = vunpack.c.l.b16 %v1299
          %v1387 = vunpack.c.h.b16 %v1299
          %v1388 = vunpack.c.l.b16 %v1300
          %v1389 = vunpack.c.h.b16 %v1300
          %v1390 = vunpack.c.l.b16 %v1301
          %v1391 = vunpack.c.h.b16 %v1301
          %v1392 = vunpack.c.l.b16 %v1302
          %v1393 = vunpack.c.h.b16 %v1302
          %v1394 = vunpack.c.l.b16 %v1303
          %v1395 = vunpack.c.h.b16 %v1303
          %v1396 = vunpack.c.l.b16 %v1304
          %v1397 = vunpack.c.h.b16 %v1304
          %v1398 = vunpack.c.l.b16 %v1305
          %v1399 = vunpack.c.h.b16 %v1305
          %v1400 = vunpack.c.l.b16 %v1306
          %v1401 = vunpack.c.h.b16 %v1306
          %v1402 = vunpack.c.l.b16 %v1307
          %v1403 = vunpack.c.h.b16 %v1307
          %v1404 = vpack.c.b16 %v1340, %v1340
          %v1405 = vpack.c.b16 %v1341, %v1341
          %v1406 = vpack.c.b16 %v1342, %v1342
          %v1407 = vpack.c.b16 %v1343, %v1343
          %v1408 = vpack.c.b16 %v1344, %v1344
          %v1409 = vpack.c.b16 %v1345, %v1345
          %v1410 = vpack.c.b16 %v1346, %v1346
          %v1411 = vpack.c.b16 %v1347, %v1347
          %v1412 = vpack.c.b16 %v1348, %v1348
          %v1413 = vpack.c.b16 %v1349, %v1349
          %v1414 = vpack.c.b16 %v1350, %v1350
          %v1415 = vpack.c.b16 %v1351, %v1351
          %v1416 = vpack.c.b16 %v1352, %v1352
          %v1417 = vpack.c.b16 %v1353, %v1353
          %v1418 = vpack.c.b16 %v1354, %v1354
          %v1419 = vpack.c.b16 %v1355, %v1355
          %v1420 = vpack.c.b16 %v1356, %v1356
          %v1421 = vpack.c.b16 %v1357, %v1357
          %v1422 = vpack.c.b16 %v1358, %v1358
          %v1423 = vpack.c.b16 %v1359, %v1359
          %v1424 = vpack.c.b16 %v1360, %v1360
          %v1425 = vpack.c.b16 %v1361, %v1361
          %v1426 = vpack.c.b16 %v1362, %v1362
          %v1427 = vpack.c.b16 %v1363, %v1363
          %v1428 = vpack.c.b16 %v1364, %v1364
          %v1429 = vpack.c.b16 %v1365, %v1365
          %v1430 = vpack.c.b16 %v1366, %v1366
          %v1431 = vpack.c.b16 %v1367, %v1367
          %v1432 = vpack.c.b16 %v1368, %v1368
          %v1433 = vpack.c.b16 %v1369, %v1369
          %v1434 = vpack.c.b16 %v1370, %v1370
          %v1435 = vpack.c.b16 %v1371, %v1371
          %v1436 = vpack.c.b16 %v1372, %v1372
          %v1437 = vpack.c.b16 %v1373, %v1373
          %v1438 = vpack.c.b16 %v1374, %v1374
          %v1439 = vpack.c.b16 %v1375, %v1375
          %v1440 = vpack.c.b16 %v1376, %v1376
          %v1441 = vpack.c.b16 %v1377, %v1377
          %v1442 = vpack.c.b16 %v1378, %v1378
          %v1443 = vpack.c.b16 %v1379, %v1379
          %v1444 = vpack.c.b16 %v1380, %v1380
          %v1445 = vpack.c.b16 %v1381, %v1381
          %v1446 = vpack.c.b16 %v1382, %v1382
          %v1447 = vpack.c.b16 %v1383, %v1383
          %v1448 = vpack.c.b16 %v1384, %v1384
          %v1449 = vpack.c.b16 %v1385, %v1385
          %v1450 = vpack.c.b16 %v1386, %v1386
          %v1451 = vpack.c.b16 %v1387, %v1387
          %v1452 = vpack.c.b16 %v1388, %v1388
          %v1453 = vpack.c.b16 %v1389, %v1389
          %v1454 = vpack.c.b16 %v1390, %v1390
          %v1455 = vpack.c.b16 %v1391, %v1391
          %v1456 = vpack.c.b16 %v1392, %v1392
          %v1457 = vpack.c.b16 %v1393, %v1393
          %v1458 = vpack.c.b16 %v1394, %v1394
          %v1459 = vpack.c.b16 %v1395, %v1395
          %v1460 = vpack.c.b16 %v1396, %v1396
          %v1461 = vpack.c.b16 %v1397, %v1397
          %v1462 = vpack.c.b16 %v1398, %v1398
          %v1463 = vpack.c.b16 %v1399, %v1399
          %v1464 = vpack.c.b16 %v1400, %v1400
          %v1465 = vpack.c.b16 %v1401, %v1401
          %v1466 = vpack.c.b16 %v1402, %v1402
          %v1467 = vpack.c.b16 %v1403, %v1403
          %1532 = vst [vmem:[%s228] sm:$0xf] %v1404
          %1533 = vst [vmem:[%s228 + $0x4] sm:$0xf] %v1405
          %1534 = vst [vmem:[%s228 + $0x8] sm:$0xf] %v1406
          %1535 = vst [vmem:[%s228 + $0xc] sm:$0xf] %v1407
          %1536 = vst [vmem:[%s228 + $0x10] sm:$0xf] %v1408
          %1537 = vst [vmem:[%s228 + $0x14] sm:$0xf] %v1409
          %1538 = vst [vmem:[%s228 + $0x18] sm:$0xf] %v1410
          %1539 = vst [vmem:[%s228 + $0x1c] sm:$0xf] %v1411
          %1540 = vst [vmem:[%s228 + $0x20] sm:$0xf] %v1412
          %1541 = vst [vmem:[%s228 + $0x24] sm:$0xf] %v1413
          %1542 = vst [vmem:[%s228 + $0x28] sm:$0xf] %v1414
          %1543 = vst [vmem:[%s228 + $0x2c] sm:$0xf] %v1415
          %1544 = vst [vmem:[%s228 + $0x30] sm:$0xf] %v1416
          %1545 = vst [vmem:[%s228 + $0x34] sm:$0xf] %v1417
          %1546 = vst [vmem:[%s228 + $0x38] sm:$0xf] %v1418
          %1547 = vst [vmem:[%s228 + $0x3c] sm:$0xf] %v1419
          %1548 = vst [vmem:[%s228 + $0x40] sm:$0xf] %v1420
          %1549 = vst [vmem:[%s228 + $0x44] sm:$0xf] %v1421
          %1550 = vst [vmem:[%s228 + $0x48] sm:$0xf] %v1422
          %1551 = vst [vmem:[%s228 + $0x4c] sm:$0xf] %v1423
          %1552 = vst [vmem:[%s228 + $0x50] sm:$0xf] %v1424
          %1553 = vst [vmem:[%s228 + $0x54] sm:$0xf] %v1425
          %1554 = vst [vmem:[%s228 + $0x58] sm:$0xf] %v1426
          %1555 = vst [vmem:[%s228 + $0x5c] sm:$0xf] %v1427
          %1556 = vst [vmem:[%s228 + $0x60] sm:$0xf] %v1428
          %1557 = vst [vmem:[%s228 + $0x64] sm:$0xf] %v1429
          %1558 = vst [vmem:[%s228 + $0x68] sm:$0xf] %v1430
          %1559 = vst [vmem:[%s228 + $0x6c] sm:$0xf] %v1431
          %1560 = vst [vmem:[%s228 + $0x70] sm:$0xf] %v1432
          %1561 = vst [vmem:[%s228 + $0x74] sm:$0xf] %v1433
          %1562 = vst [vmem:[%s228 + $0x78] sm:$0xf] %v1434
          %1563 = vst [vmem:[%s228 + $0x7c] sm:$0xf] %v1435
          %1564 = vst [vmem:[%s228 + $0x80] sm:$0xf] %v1436
          %1565 = vst [vmem:[%s228 + $0x84] sm:$0xf] %v1437
          %1566 = vst [vmem:[%s228 + $0x88] sm:$0xf] %v1438
          %1567 = vst [vmem:[%s228 + $0x8c] sm:$0xf] %v1439
          %1568 = vst [vmem:[%s228 + $0x90] sm:$0xf] %v1440
          %1569 = vst [vmem:[%s228 + $0x94] sm:$0xf] %v1441
          %1570 = vst [vmem:[%s228 + $0x98] sm:$0xf] %v1442
          %1571 = vst [vmem:[%s228 + $0x9c] sm:$0xf] %v1443
          %1572 = vst [vmem:[%s228 + $0xa0] sm:$0xf] %v1444
          %1573 = vst [vmem:[%s228 + $0xa4] sm:$0xf] %v1445
          %1574 = vst [vmem:[%s228 + $0xa8] sm:$0xf] %v1446
          %1575 = vst [vmem:[%s228 + $0xac] sm:$0xf] %v1447
          %1576 = vst [vmem:[%s228 + $0xb0] sm:$0xf] %v1448
          %1577 = vst [vmem:[%s228 + $0xb4] sm:$0xf] %v1449
          %1578 = vst [vmem:[%s228 + $0xb8] sm:$0xf] %v1450
          %1579 = vst [vmem:[%s228 + $0xbc] sm:$0xf] %v1451
          %1580 = vst [vmem:[%s228 + $0xc0] sm:$0xf] %v1452
          %1581 = vst [vmem:[%s228 + $0xc4] sm:$0xf] %v1453
          %1582 = vst [vmem:[%s228 + $0xc8] sm:$0xf] %v1454
          %1583 = vst [vmem:[%s228 + $0xcc] sm:$0xf] %v1455
          %1584 = vst [vmem:[%s228 + $0xd0] sm:$0xf] %v1456
          %1585 = vst [vmem:[%s228 + $0xd4] sm:$0xf] %v1457
          %1586 = vst [vmem:[%s228 + $0xd8] sm:$0xf] %v1458
          %1587 = vst [vmem:[%s228 + $0xdc] sm:$0xf] %v1459
          %1588 = vst [vmem:[%s228 + $0xe0] sm:$0xf] %v1460
          %1589 = vst [vmem:[%s228 + $0xe4] sm:$0xf] %v1461
          %1590 = vst [vmem:[%s228 + $0xe8] sm:$0xf] %v1462
          %1591 = vst [vmem:[%s228 + $0xec] sm:$0xf] %v1463
          %1592 = vst [vmem:[%s228 + $0xf0] sm:$0xf] %v1464
          %1593 = vst [vmem:[%s228 + $0xf4] sm:$0xf] %v1465
          %1594 = vst [vmem:[%s228 + $0xf8] sm:$0xf] %v1466
          %1595 = vst [vmem:[%s228 + $0xfc] sm:$0xf] %v1467
        $region40: #{tpu_custom_call.1} parent=31 // pred_fallthru
          _
        %s1596 = sand.u32 %s128, 1
        %s1597 = scalar_lea.sflag [#allocation4], %s1596
        %s1598 = sand.u32 %s128, 1
        %s1599 = smul.addr %s1598, 256
        %s1600 = scalar_lea.vmem [#allocation3], %s1599
        // Predicated region
        $region41: #{tpu_custom_call.1} parent=31 // pred_check
          %p1601 = pneg %p138
        $region42: #{tpu_custom_call.1} parent=31 // pred_check_branch
          %1603 = sbr.rel (%p1601) target = $region44
        $region43: #{tpu_custom_call.1} parent=31 // pred_region
          %s1604 = smul.u32 64, %s22
          %s1606 = ssub.s32 4096, 4096
          %1607 = vsyncadd %s1597, %s1606
          %s1608 = sadd.s32 %s23, %s1604
          %s1609 = smul.addr %s1608, 64
          %s1610 = scalar_lea.hbm %s3, %s1609
          %s1611 = sshll.u32 %s1600, 4
          %s1612 = int_to_ptr.vmem [resolvable:$true] %s1611
          %1617 = dma.vmem_to_hbm [thread:$0]  %s1612, 4096, %s1610, %s1597, 64, 64, 4
        $region44: #{tpu_custom_call.1} parent=31 // pred_fallthru
          _
      $region32: #{tpu_custom_call.1} parent=5 // pred_fallthru
        _
      %p1618 = scmp.le.s32.totalorder 2, %s12
      // Predicated region
      $region45: #{tpu_custom_call.1} parent=5 // pred_check
        %p1619 = pneg %p1618
      $region46: #{tpu_custom_call.1} parent=5 // pred_check_branch
        %1621 = sbr.rel (%p1619) target = $region48
      $region47: #{tpu_custom_call.1} parent=5 // pred_region
        %s1622 = ssub.s32 %s12, 2
        // Predicated region
        $region49: #{tpu_custom_call.1} parent=47 // pred_check
          %p1623 = pneg %p144
        $region50: #{tpu_custom_call.1} parent=47 // pred_check_branch
          %1625 = sbr.rel (%p1623) target = $region52
        $region51: #{tpu_custom_call.1} parent=47 // pred_region
          %s1626 = sand.u32 %s129, 1
          %s1627 = scalar_lea.sflag [#allocation4], %s1626
          %s1628 = sand.u32 %s129, 1
          %s1629 = smul.addr %s1628, 256
          %s1630 = scalar_lea.vmem [#allocation3], %s1629
          %1631 = dma.done %s1627, 4096
        $region52: #{tpu_custom_call.1} parent=47 // pred_fallthru
          _
      $region48: #{tpu_custom_call.1} parent=5 // pred_fallthru
        _
    $region6: #{tpu_custom_call.1} parent=1 // loop_footer
      %s16 = sadd.s32 1, %s12
    $region7: #{tpu_custom_call.1} parent=1 // loop_footer_branch
      %11 = sbr.rel target = $region3
    $region8: #{tpu_custom_call.1} parent=1 // loop_exit
      _
    %1632 = vsyncpa [#allocation4], 1
    %s1633 = scalar_lea.sflag [#allocation4], 1
    %1634 = vsyncpa %s1633, 1

</llo_original>
